<compile_context>
chip_gen: v7x
topology: tpu7x:2x2x1
jax: 0.10.0
libtpu: 0.0.40
codegen_flags: <defaults>
</compile_context>

<pallas_src>
import functools

import numpy as np
import jax
import jax.numpy as jnp
from jax.experimental import pallas as pl
from jax.experimental.pallas import tpu as pltpu

EPS = 1e-7


def _round_up(x, m):
    return (x + m - 1) // m * m


def _pick_tile_n(n_rows_per_level):
    """Row-tile size.  Big tiles amortize per-step overhead (M barely affects
    MXU efficiency); cap at 512 (VMEM-safe on every generation, incl. v5e's
    16 MiB scoped default) and at the smallest level's row count so small
    levels don't pad up to a full tile.  For the single-level small-N case,
    force >=2 steps so both v7x TensorCores are used."""
    n_min = min(n_rows_per_level)
    t = min(512, _round_up(n_min, 8))
    if len(n_rows_per_level) == 1 and n_rows_per_level[0] > 8 \
            and _round_up(n_rows_per_level[0], t) <= t:
        t = _round_up((n_rows_per_level[0] + 1) // 2, 8)
    return max(t, 8)


# --------------------------------------------------------------------------
# Kernel: per row-tile, select the level's weights and run
#   Linear(C->nc) -> ReLU -> Linear(nc->nc) -> L2-normalize.
# --------------------------------------------------------------------------
def _mlp_l2norm_kernel(lvl_ref, x_ref, w1_ref, b1_ref, w2_ref, b2_ref, o_ref):
    # lvl_ref : (num_tiles,) int32 in SMEM -- consumed by the index_maps only.
    # x_ref   : (tile_n, Ck)   bf16 sampled patch rows (column-padded)
    # w1_ref  : (1, Ck, NCp)   bf16   b1_ref: (1, 1, NCp) f32
    # w2_ref  : (1, NCp, NCp)  bf16   b2_ref: (1, 1, NCp) f32
    # o_ref   : (tile_n, NCp)  out_dtype (bf16 by default)
    del lvl_ref
    x = x_ref[...]
    # Linear(C -> nc): bf16 MXU matmul, f32 accumulate; bias + ReLU in f32
    # (v5e has no bf16 VPU/EUP, so the epilogue stays f32 everywhere).
    h = jnp.dot(x, w1_ref[0], preferred_element_type=jnp.float32) + b1_ref[0]
    h = jnp.maximum(h, 0.0)
    # Linear(nc -> nc)
    y = jnp.dot(h.astype(w2_ref.dtype), w2_ref[0],
                preferred_element_type=jnp.float32) + b2_ref[0]
    # Normalize(power=2): y / (sqrt(sum(y^2)) + 1e-7); eps folded into a single
    # EUP rsqrt (differs from torch by ~eps^2/ssq; exact 0 for all-zero rows).
    ssq = jnp.sum(y * y, axis=-1, keepdims=True)
    o_ref[...] = (y * jax.lax.rsqrt(ssq + EPS * EPS)).astype(o_ref.dtype)


def _grouped_mlp_call(lvl_ids, x_all, w1s, b1s, w2s, b2s, *, tile_n, out_dtype):
    Ntot, Ck = x_all.shape
    _, _, NCp = w1s.shape
    assert Ntot % tile_n == 0 and Ck % 128 == 0 and NCp % 128 == 0
    num_tiles = Ntot // tile_n
    return pl.pallas_call(
        _mlp_l2norm_kernel,
        out_shape=jax.ShapeDtypeStruct((Ntot, NCp), out_dtype),
        grid_spec=pltpu.PrefetchScalarGridSpec(
            num_scalar_prefetch=1,              # lvl_ids -> SMEM
            grid=(num_tiles,),
            in_specs=[
                # sampled rows, tiled along the row grid
                pl.BlockSpec((tile_n, Ck), lambda i, lvl: (i, 0)),
                # per-level weight blocks, selected by the prefetched tile->level map
                pl.BlockSpec((1, Ck, NCp), lambda i, lvl: (lvl[i], 0, 0)),
                pl.BlockSpec((1, 1, NCp), lambda i, lvl: (lvl[i], 0, 0)),
                pl.BlockSpec((1, NCp, NCp), lambda i, lvl: (lvl[i], 0, 0)),
                pl.BlockSpec((1, 1, NCp), lambda i, lvl: (lvl[i], 0, 0)),
            ],
            out_specs=pl.BlockSpec((tile_n, NCp), lambda i, lvl: (i, 0)),
        ),
        compiler_params=pltpu.CompilerParams(
            # row tiles are independent -> shard across v7x's two TensorCores
            dimension_semantics=("parallel",)),
    )(lvl_ids, x_all, w1s, b1s, w2s, b2s)


@functools.partial(jax.jit,
                   static_argnames=("n_valid", "nc", "tile_n", "out_dtype"))
def patch_mlp_grouped(feats_rows, row_ids, w1s, b1s, w2s, b2s,
                      *, n_valid, nc, tile_n, out_dtype):
    """feats_rows: tuple of (B*H*W, C_l) channels-last row views (one/level).
       row_ids   : tuple of (Np_l,) int32 flat row indices, padded to tile_n.
       Returns a tuple of (N_l, nc) arrays (one per level)."""
    L = len(feats_rows)
    Ck, NCp = w1s.shape[1], w1s.shape[2]
    Np = [int(r.shape[0]) for r in row_ids]
    assert all(n % tile_n == 0 for n in Np)
    Ntot = sum(Np)

    # Row-gather + cast + column-pad + concat all levels (fused by XLA).
    x_all = jnp.zeros((Ntot, Ck), jnp.bfloat16)
    off = 0
    for l in range(L):
        C_l = feats_rows[l].shape[1]
        x_l = jnp.take(feats_rows[l], row_ids[l], axis=0).astype(jnp.bfloat16)
        x_all = x_all.at[off:off + Np[l], :C_l].set(x_l)
        off += Np[l]

    # Static tile -> level map (scalar-prefetched into SMEM).
    lvl_ids = jnp.asarray(np.concatenate(
        [np.full(Np[l] // tile_n, l, dtype=np.int32) for l in range(L)]))

    out = _grouped_mlp_call(lvl_ids, x_all, w1s, b1s, w2s, b2s,
                            tile_n=tile_n, out_dtype=out_dtype)

    # De-pad (no-ops in the default nc=256 / num_patches=256 configuration).
    outs, off = [], 0
    for l in range(L):
        o = out[off:off + n_valid[l]]
        if nc != NCp:
            o = o[:, :nc]
        outs.append(o)
        off += Np[l]
    return tuple(outs)


# --------------------------------------------------------------------------
# Parameters: xavier-normal init (like init_net 'xavier', gain=init_gain),
# packed / padded / cast once.
# --------------------------------------------------------------------------
def init_mlp_params(channel_list, nc, init_gain, key):
    params = []
    keys = jax.random.split(key, len(channel_list))
    for c, pk in zip(channel_list, keys):
        k1, k2 = jax.random.split(pk)
        std1 = init_gain * (2.0 / (c + nc)) ** 0.5
        std2 = init_gain * (2.0 / (nc + nc)) ** 0.5
        w1 = std1 * jax.random.normal(k1, (c, nc), dtype=jnp.float32)
        b1 = jnp.zeros((1, nc), jnp.float32)
        w2 = std2 * jax.random.normal(k2, (nc, nc), dtype=jnp.float32)
        b2 = jnp.zeros((1, nc), jnp.float32)
        params.append((w1, b1, w2, b2))
    return params


def pack_mlp_params(params_f32, compute_dtype=jnp.bfloat16):
    """One-time pad (lane-aligned) + cast + stack of all levels' MLP weights."""
    L = len(params_f32)
    nc = params_f32[0][0].shape[1]
    c_max = max(w1.shape[0] for (w1, _, _, _) in params_f32)
    Ck = _round_up(c_max, 128)
    NCp = _round_up(nc, 128)
    w1s = jnp.zeros((L, Ck, NCp), compute_dtype)
    b1s = jnp.zeros((L, 1, NCp), jnp.float32)
    w2s = jnp.zeros((L, NCp, NCp), compute_dtype)
    b2s = jnp.zeros((L, 1, NCp), jnp.float32)
    for l, (w1, b1, w2, b2) in enumerate(params_f32):
        C = w1.shape[0]
        w1s = w1s.at[l, :C, :nc].set(w1.astype(compute_dtype))
        b1s = b1s.at[l, :, :nc].set(b1.reshape(1, nc))
        w2s = w2s.at[l, :nc, :nc].set(w2.astype(compute_dtype))
        b2s = b2s.at[l, :, :nc].set(b2.reshape(1, nc))
    return dict(w1s=w1s, b1s=b1s, w2s=w2s, b2s=b2s, nc=nc)


# --------------------------------------------------------------------------
# PatchSampleF.forward (use_mlp=True, num_patches>0, weight_map=None)
# --------------------------------------------------------------------------
def patch_sample_f_forward(feats, packed_params, num_patches, perm_key,
                           patch_ids=None, channels_last=True, tile_n=None,
                           out_dtype=jnp.bfloat16):
    """feats: list of feature maps, NHWC if channels_last else NCHW (PyTorch).
       Returns (list of (B*P_l, nc) arrays, list of patch-id arrays)."""
    L = len(feats)
    keys = jax.random.split(perm_key, L)

    feats_rows, return_ids, n_valid, dims = [], [], [], []
    for l, feat in enumerate(feats):
        if channels_last:
            B, H, W, C = feat.shape
            rows_view = feat.reshape(B * H * W, C)
        else:
            # TODO(synk): emit backbone features in NHWC so this transpose
            # (a full feature-map pass) disappears from the hot path.
            B, C, H, W = feat.shape
            rows_view = jnp.transpose(feat, (0, 2, 3, 1)).reshape(B * H * W, C)
        HW = H * W
        P = min(num_patches, HW) if num_patches > 0 else HW
        if patch_ids is not None:
            pid = patch_ids[l]
        else:
            pid = jax.random.permutation(keys[l], HW)[:P]
        feats_rows.append(rows_view)
        return_ids.append(pid)
        n_valid.append(B * pid.shape[0])
        dims.append((B, HW))

    if tile_n is None:
        tile_n = _pick_tile_n(n_valid)

    row_ids = []
    for l in range(L):
        B, HW = dims[l]
        pid = return_ids[l]
        N = n_valid[l]
        Np = _round_up(N, tile_n)
        rows = (jnp.arange(B, dtype=jnp.int32)[:, None] * HW
                + pid[None, :].astype(jnp.int32)).reshape(-1)
        if Np > N:
            rows = jnp.concatenate([rows, jnp.zeros((Np - N,), jnp.int32)])
        row_ids.append(rows)

    outs = patch_mlp_grouped(
        tuple(feats_rows), tuple(row_ids),
        packed_params["w1s"], packed_params["b1s"],
        packed_params["w2s"], packed_params["b2s"],
        n_valid=tuple(n_valid), nc=packed_params["nc"],
        tile_n=tile_n, out_dtype=out_dtype)
    return list(outs), return_ids


# --------------------------------------------------------------------------
# Pure-f32 reference (original PyTorch math, no bf16 casts).
# --------------------------------------------------------------------------
def _ref_mlp_l2norm_f32(x, w1, b1, w2, b2):
    hi = jax.lax.Precision.HIGHEST
    h = jnp.maximum(jnp.dot(x, w1, precision=hi) + b1, 0.0)
    y = jnp.dot(h, w2, precision=hi) + b2
    norm = jnp.sqrt(jnp.sum(y * y, axis=1, keepdims=True))
    return y / (norm + EPS)


if __name__ == "__main__":
    key = jax.random.PRNGKey(0)
    k_feat, k_param, k_perm = jax.random.split(key, 3)

    B, H, W = 2, 16, 16
    channel_list = [4, 8]      # two feature levels with different channel counts
    NC = 32                    # mlp hidden/out dim (module default nc=256)
    num_patches = 256          # PatchSampleF default; N = B*256 = 512 rows/level
    init_gain = 0.02

    fkeys = jax.random.split(k_feat, len(channel_list))
    # Backbone features generated directly in TPU-native NHWC layout.
    # TODO(synk): ResGenerator conv backbone left to XLA (no Pallas kernel).
    feats_nhwc = [jax.random.normal(fk, (B, H, W, c), dtype=jnp.float32)
                  for c, fk in zip(channel_list, fkeys)]

    params_f32 = init_mlp_params(channel_list, NC, init_gain, k_param)
    packed = pack_mlp_params(params_f32)

    return_feats, return_ids = patch_sample_f_forward(
        feats_nhwc, packed, num_patches, k_perm, channels_last=True)
    return_feats = [jax.block_until_ready(f) for f in return_feats]

    # Correctness check against the original f32 PyTorch-order computation:
    # NCHW -> permute(0,2,3,1) -> flatten spatial -> fancy-index patch ids ->
    # Linear/ReLU/Linear (f32) -> L2 normalize.
    for l, feat in enumerate(feats_nhwc):
        Bc, Hc, Wc, C = feat.shape
        feat_nchw = jnp.transpose(feat, (0, 3, 1, 2))        # PyTorch layout
        pid = return_ids[l]
        P = pid.shape[0]
        fr = jnp.transpose(feat_nchw, (0, 2, 3, 1)).reshape(Bc, Hc * Wc, C)
        x_sample = fr[:, pid, :].reshape(Bc * P, C)
        ref = _ref_mlp_l2norm_f32(x_sample, *params_f32[l])
        got = return_feats[l].astype(jnp.float32)
        assert got.shape == (Bc * P, NC), got.shape
        err = float(jnp.max(jnp.abs(got - ref)))
        # bf16 matmul inputs + bf16 output vs pure-f32 reference
        assert jnp.allclose(got, ref, atol=3e-2, rtol=3e-2), (
            f"level {l}: max abs diff {err}")

    print("KERNEL_OK")
</pallas_src>

<mosaic_0001>
module attributes {stable_mosaic.version = 11 : i64} {
  func.func @_mlp_l2norm_kernel(%arg0: i32, %arg1: memref<2xi32, #tpu.memory_space<smem>>, %arg2: memref<512x128xbf16, #tpu.memory_space<vmem>>, %arg3: memref<1x128x128xbf16, #tpu.memory_space<vmem>>, %arg4: memref<1x1x128xf32, #tpu.memory_space<vmem>>, %arg5: memref<1x128x128xbf16, #tpu.memory_space<vmem>>, %arg6: memref<1x1x128xf32, #tpu.memory_space<vmem>>, %arg7: memref<512x128xbf16, #tpu.memory_space<vmem>>) attributes {dimension_semantics = [#tpu.dimension_semantics<parallel>], iteration_bounds = array<i64: 2>, scalar_prefetch = 1 : i64, scratch_operands = 0 : i64, tpu.core_type = #tpu.core_type<tc>, window_params = [{transform_indices = @transform_0, window_bounds = array<i64: 512, 128>}, {transform_indices = @transform_1, window_bounds = array<i64: 1, 128, 128>}, {transform_indices = @transform_2, window_bounds = array<i64: 1, 1, 128>}, {transform_indices = @transform_3, window_bounds = array<i64: 1, 128, 128>}, {transform_indices = @transform_4, window_bounds = array<i64: 1, 1, 128>}, {transform_indices = @transform_5, window_bounds = array<i64: 512, 128>}]} {
    %c0 = arith.constant 0 : index
    %c0_0 = arith.constant 0 : index
    %0 = vector.load %arg2[%c0, %c0_0] : memref<512x128xbf16, #tpu.memory_space<vmem>>, vector<512x128xbf16>
    %c0_1 = arith.constant 0 : index
    %c0_2 = arith.constant 0 : index
    %c0_3 = arith.constant 0 : index
    %1 = vector.load %arg3[%c0_1, %c0_2, %c0_3] : memref<1x128x128xbf16, #tpu.memory_space<vmem>>, vector<1x128x128xbf16>
    %2 = vector.shape_cast %1 : vector<1x128x128xbf16> to vector<128x128xbf16>
    %cst = arith.constant dense<0.000000e+00> : vector<512x128xf32>
    %3 = tpu.matmul %0, %2, %cst {dimension_numbers = #tpu.dot_dimension_numbers<[1], [0], [0], [1], [0, 0, 1, 1], [], []>} : vector<512x128xbf16>, vector<128x128xbf16>, vector<512x128xf32> -> vector<512x128xf32>
    %c0_4 = arith.constant 0 : index
    %c0_5 = arith.constant 0 : index
    %c0_6 = arith.constant 0 : index
    %4 = vector.load %arg4[%c0_4, %c0_5, %c0_6] : memref<1x1x128xf32, #tpu.memory_space<vmem>>, vector<1x1x128xf32>
    %5 = vector.shape_cast %4 : vector<1x1x128xf32> to vector<1x128xf32>
    %6 = vector.broadcast %5 : vector<1x128xf32> to vector<512x128xf32>
    %7 = arith.addf %3, %6 : vector<512x128xf32>
    %cst_7 = arith.constant 0.000000e+00 : f32
    %8 = vector.broadcast %cst_7 : f32 to vector<512x128xf32>
    %9 = arith.maximumf %7, %8 : vector<512x128xf32>
    %10 = arith.truncf %9 : vector<512x128xf32> to vector<512x128xbf16>
    %c0_8 = arith.constant 0 : index
    %c0_9 = arith.constant 0 : index
    %c0_10 = arith.constant 0 : index
    %11 = vector.load %arg5[%c0_8, %c0_9, %c0_10] : memref<1x128x128xbf16, #tpu.memory_space<vmem>>, vector<1x128x128xbf16>
    %12 = vector.shape_cast %11 : vector<1x128x128xbf16> to vector<128x128xbf16>
    %cst_11 = arith.constant dense<0.000000e+00> : vector<512x128xf32>
    %13 = tpu.matmul %10, %12, %cst_11 {dimension_numbers = #tpu.dot_dimension_numbers<[1], [0], [0], [1], [0, 0, 1, 1], [], []>} : vector<512x128xbf16>, vector<128x128xbf16>, vector<512x128xf32> -> vector<512x128xf32>
    %c0_12 = arith.constant 0 : index
    %c0_13 = arith.constant 0 : index
    %c0_14 = arith.constant 0 : index
    %14 = vector.load %arg6[%c0_12, %c0_13, %c0_14] : memref<1x1x128xf32, #tpu.memory_space<vmem>>, vector<1x1x128xf32>
    %15 = vector.shape_cast %14 : vector<1x1x128xf32> to vector<1x128xf32>
    %16 = vector.broadcast %15 : vector<1x128xf32> to vector<512x128xf32>
    %17 = arith.addf %13, %16 : vector<512x128xf32>
    %18 = arith.mulf %17, %17 : vector<512x128xf32>
    %cst_15 = arith.constant dense<0.000000e+00> : vector<512xf32>
    %19 = vector.multi_reduction <add>, %18, %cst_15 [1] : vector<512x128xf32> to vector<512xf32>
    %20 = vector.shape_cast %19 : vector<512xf32> to vector<512x1xf32>
    %cst_16 = arith.constant 9.99999982E-15 : f32
    %21 = vector.broadcast %cst_16 : f32 to vector<512x1xf32>
    %22 = arith.addf %20, %21 : vector<512x1xf32>
    %23 = math.rsqrt %22 : vector<512x1xf32>
    %24 = vector.broadcast %23 : vector<512x1xf32> to vector<512x128xf32>
    %25 = arith.mulf %17, %24 : vector<512x128xf32>
    %26 = arith.truncf %25 : vector<512x128xf32> to vector<512x128xbf16>
    %c0_17 = arith.constant 0 : index
    %c0_18 = arith.constant 0 : index
    %27 = vector.load %arg7[%c0_17, %c0_18] : memref<512x128xbf16, #tpu.memory_space<vmem>>, vector<512x128xbf16>
    tpu.vector_store %arg7[%c0_17, %c0_18], %26 {strides = array<i32>} : memref<512x128xbf16, #tpu.memory_space<vmem>>, vector<512x128xbf16>,
    return
  }
  func.func @transform_0(%arg0: i32, %arg1: memref<2xi32, #tpu.memory_space<smem>>) -> (i32, i32) {
    %c0_i32 = arith.constant 0 : i32
    %c0_i32_0 = arith.constant 0 : i32
    return %arg0, %c0_i32 : i32, i32
  }
  func.func @transform_1(%arg0: i32, %arg1: memref<2xi32, #tpu.memory_space<smem>>) -> (i32, i32, i32) {
    %0 = arith.index_cast %arg0 : i32 to index
    %1 = memref.load %arg1[%0] : memref<2xi32, #tpu.memory_space<smem>>
    %c0_i32 = arith.constant 0 : i32
    %c0_i32_0 = arith.constant 0 : i32
    %c0_i32_1 = arith.constant 0 : i32
    return %1, %c0_i32, %c0_i32_0 : i32, i32, i32
  }
  func.func @transform_2(%arg0: i32, %arg1: memref<2xi32, #tpu.memory_space<smem>>) -> (i32, i32, i32) {
    %0 = arith.index_cast %arg0 : i32 to index
    %1 = memref.load %arg1[%0] : memref<2xi32, #tpu.memory_space<smem>>
    %c0_i32 = arith.constant 0 : i32
    %c0_i32_0 = arith.constant 0 : i32
    %c0_i32_1 = arith.constant 0 : i32
    return %1, %c0_i32, %c0_i32_0 : i32, i32, i32
  }
  func.func @transform_3(%arg0: i32, %arg1: memref<2xi32, #tpu.memory_space<smem>>) -> (i32, i32, i32) {
    %0 = arith.index_cast %arg0 : i32 to index
    %1 = memref.load %arg1[%0] : memref<2xi32, #tpu.memory_space<smem>>
    %c0_i32 = arith.constant 0 : i32
    %c0_i32_0 = arith.constant 0 : i32
    %c0_i32_1 = arith.constant 0 : i32
    return %1, %c0_i32, %c0_i32_0 : i32, i32, i32
  }
  func.func @transform_4(%arg0: i32, %arg1: memref<2xi32, #tpu.memory_space<smem>>) -> (i32, i32, i32) {
    %0 = arith.index_cast %arg0 : i32 to index
    %1 = memref.load %arg1[%0] : memref<2xi32, #tpu.memory_space<smem>>
    %c0_i32 = arith.constant 0 : i32
    %c0_i32_0 = arith.constant 0 : i32
    %c0_i32_1 = arith.constant 0 : i32
    return %1, %c0_i32, %c0_i32_0 : i32, i32, i32
  }
  func.func @transform_5(%arg0: i32, %arg1: memref<2xi32, #tpu.memory_space<smem>>) -> (i32, i32) {
    %c0_i32 = arith.constant 0 : i32
    %c0_i32_0 = arith.constant 0 : i32
    return %arg0, %c0_i32 : i32, i32
  }
}

</mosaic_0001>

<llo_original>
// kernel: patch_mlp_grouped.1
$region0: #{patch_mlp_grouped.1}
  #allocation0 [shape = 'u32[]', space=smem, size = 0x4, offset = 0x4, fixed_abs, tag = 'smem constant byte address 0x4 - core index']
  #allocation1 [shape = 'u32[144,128]{1,0:T(1,128)}', space=vmem, size = 0x12000, scoped, tag = 'internal scratch']
  #allocation2 [shape = 's32[1]{0}', space=sflag, size = 0x4, scoped, tag = 'scoped memory for patch_mlp_grouped.1']
  #allocation3 [shape = 'u8[512]{0}', space=smem, size = 0x200, scoped, tag = 'prefetched SMEM operand 0']
  %s0 = inlined_call_operand.vmem [shape: s32[2], index: 0, kind: input, shape index: {}]
  %s1 = inlined_call_operand.vmem [shape: bf16[1024,128], index: 1, kind: input, shape index: {}]
  %s2 = inlined_call_operand.vmem [shape: bf16[2,128,128], index: 2, kind: input, shape index: {}]
  %s3 = inlined_call_operand.vmem [shape: f32[2,1,128], index: 3, kind: input, shape index: {}]
  %s4 = inlined_call_operand.vmem [shape: bf16[2,128,128], index: 4, kind: input, shape index: {}]
  %s5 = inlined_call_operand.vmem [shape: f32[2,1,128], index: 5, kind: input, shape index: {}]
  %s6 = inlined_call_operand.vmem [shape: bf16[1024,128], index: 6, kind: output, shape index: {}]
  %s7 = sld [smem:[#allocation0]]
  $region53: #{patch_mlp_grouped.1} parent=0
    _
  %s9 = ssub.s32 1, %s7
  %s10 = scalar_select 0, %s9, %s7
  %s11 = sshll.u32 %s0, 4
  %s12 = int_to_ptr.vmem [resolvable:$true] %s11
  %14 = dma.vmem_to_smem %s12, 16, [#allocation3], [#allocation2]
  %15 = dma.done [#allocation2], 16
  %16 = sfence
  loop: start=0, step=1, limit=4
  $region2: #{patch_mlp_grouped.1} parent=0 // loop_pre_header
    _
  $region3: #{patch_mlp_grouped.1} parent=0 // loop_header
    %s18 = sphi 0, %s22
    %p19 = scmp.ge.s32.totalorder %s18, 4
    %s28 = sphi 0, %s30
    %s31 = sphi 0, %s28
    %s32 = sphi 0, %s31
    %s48 = sphi 0, %s32
    %s56 = sphi 0, %s58
    %s59 = sphi 0, %s56
    %s60 = sphi 0, %s59
    %s76 = sphi 0, %s60
    %s84 = sphi 0, %s86
    %s87 = sphi 0, %s84
    %s88 = sphi 0, %s87
    %s104 = sphi 0, %s88
    %s112 = sphi 0, %s114
    %s115 = sphi 0, %s112
    %s116 = sphi 0, %s115
    %s132 = sphi 0, %s116
    %s140 = sphi 0, %s142
    %s143 = sphi 0, %s140
    %s144 = sphi 0, %s143
    %s160 = sphi 0, %s144
    %s166 = sphi 0, %s168
    %s169 = sphi 0, %s166
    %s170 = sphi 0, %s169
    %s186 = sphi 0, %s170
  $region4: #{patch_mlp_grouped.1} parent=0 // loop_header_branch
    %21 = sbr.rel (%p19) target = $region8
  $region5: #{patch_mlp_grouped.1} parent=0 // loop_body
    %s23 = ssub.s32 %s18, 1
    %s24 = ssub.s32 %s18, 2
    %s25 = sadd.s32 %s18, 1
    %s26 = ssub.s32 %s18, %s25
    %p27 = scmp.eq.s32.totalorder %s26, 0
    %s29 = sadd.s32 %s28, 1
    %s30 = scalar_select %p27, %s28, %s29
    %p33 = pneg %p27
    %p34 = scmp.eq.s32.totalorder %s18, 1
    %p35 = por %p33, %p34
    %p36 = scmp.ne.s32.totalorder %s28, %s31
    %p37 = scmp.eq.s32.totalorder %s18, 0
    %p38 = por %p36, %p37
    %p39 = scmp.ne.s32.totalorder %s28, %s31
    %p40 = scmp.eq.s32.totalorder %s23, 1
    %p41 = por %p39, %p40
    %p42 = scmp.ne.s32.totalorder %s31, %s32
    %p43 = scmp.eq.s32.totalorder %s23, 0
    %p44 = por %p42, %p43
    %p45 = scmp.ne.s32.totalorder %s31, %s32
    %p46 = scmp.eq.s32.totalorder %s24, 1
    %p47 = por %p45, %p46
    %p49 = scmp.ne.s32.totalorder %s32, %s48
    %p50 = scmp.eq.s32.totalorder %s24, 0
    %p51 = por %p49, %p50
    %s52 = sld [smem:[#allocation3 + %s18]]
    %s53 = sld [smem:[#allocation3 + %s25]]
    %s54 = ssub.s32 %s52, %s53
    %p55 = scmp.eq.s32.totalorder %s54, 0
    %s57 = sadd.s32 %s56, 1
    %s58 = scalar_select %p55, %s56, %s57
    %p61 = pneg %p55
    %p62 = scmp.eq.s32.totalorder %s18, 1
    %p63 = por %p61, %p62
    %p64 = scmp.ne.s32.totalorder %s56, %s59
    %p65 = scmp.eq.s32.totalorder %s18, 0
    %p66 = por %p64, %p65
    %p67 = scmp.ne.s32.totalorder %s56, %s59
    %p68 = scmp.eq.s32.totalorder %s23, 1
    %p69 = por %p67, %p68
    %p70 = scmp.ne.s32.totalorder %s59, %s60
    %p71 = scmp.eq.s32.totalorder %s23, 0
    %p72 = por %p70, %p71
    %p73 = scmp.ne.s32.totalorder %s59, %s60
    %p74 = scmp.eq.s32.totalorder %s24, 1
    %p75 = por %p73, %p74
    %p77 = scmp.ne.s32.totalorder %s60, %s76
    %p78 = scmp.eq.s32.totalorder %s24, 0
    %p79 = por %p77, %p78
    %s80 = sld [smem:[#allocation3 + %s18]]
    %s81 = sld [smem:[#allocation3 + %s25]]
    %s82 = ssub.s32 %s80, %s81
    %p83 = scmp.eq.s32.totalorder %s82, 0
    %s85 = sadd.s32 %s84, 1
    %s86 = scalar_select %p83, %s84, %s85
    %p89 = pneg %p83
    %p90 = scmp.eq.s32.totalorder %s18, 1
    %p91 = por %p89, %p90
    %p92 = scmp.ne.s32.totalorder %s84, %s87
    %p93 = scmp.eq.s32.totalorder %s18, 0
    %p94 = por %p92, %p93
    %p95 = scmp.ne.s32.totalorder %s84, %s87
    %p96 = scmp.eq.s32.totalorder %s23, 1
    %p97 = por %p95, %p96
    %p98 = scmp.ne.s32.totalorder %s87, %s88
    %p99 = scmp.eq.s32.totalorder %s23, 0
    %p100 = por %p98, %p99
    %p101 = scmp.ne.s32.totalorder %s87, %s88
    %p102 = scmp.eq.s32.totalorder %s24, 1
    %p103 = por %p101, %p102
    %p105 = scmp.ne.s32.totalorder %s88, %s104
    %p106 = scmp.eq.s32.totalorder %s24, 0
    %p107 = por %p105, %p106
    %s108 = sld [smem:[#allocation3 + %s18]]
    %s109 = sld [smem:[#allocation3 + %s25]]
    %s110 = ssub.s32 %s108, %s109
    %p111 = scmp.eq.s32.totalorder %s110, 0
    %s113 = sadd.s32 %s112, 1
    %s114 = scalar_select %p111, %s112, %s113
    %p117 = pneg %p111
    %p118 = scmp.eq.s32.totalorder %s18, 1
    %p119 = por %p117, %p118
    %p120 = scmp.ne.s32.totalorder %s112, %s115
    %p121 = scmp.eq.s32.totalorder %s18, 0
    %p122 = por %p120, %p121
    %p123 = scmp.ne.s32.totalorder %s112, %s115
    %p124 = scmp.eq.s32.totalorder %s23, 1
    %p125 = por %p123, %p124
    %p126 = scmp.ne.s32.totalorder %s115, %s116
    %p127 = scmp.eq.s32.totalorder %s23, 0
    %p128 = por %p126, %p127
    %p129 = scmp.ne.s32.totalorder %s115, %s116
    %p130 = scmp.eq.s32.totalorder %s24, 1
    %p131 = por %p129, %p130
    %p133 = scmp.ne.s32.totalorder %s116, %s132
    %p134 = scmp.eq.s32.totalorder %s24, 0
    %p135 = por %p133, %p134
    %s136 = sld [smem:[#allocation3 + %s18]]
    %s137 = sld [smem:[#allocation3 + %s25]]
    %s138 = ssub.s32 %s136, %s137
    %p139 = scmp.eq.s32.totalorder %s138, 0
    %s141 = sadd.s32 %s140, 1
    %s142 = scalar_select %p139, %s140, %s141
    %p145 = pneg %p139
    %p146 = scmp.eq.s32.totalorder %s18, 1
    %p147 = por %p145, %p146
    %p148 = scmp.ne.s32.totalorder %s140, %s143
    %p149 = scmp.eq.s32.totalorder %s18, 0
    %p150 = por %p148, %p149
    %p151 = scmp.ne.s32.totalorder %s140, %s143
    %p152 = scmp.eq.s32.totalorder %s23, 1
    %p153 = por %p151, %p152
    %p154 = scmp.ne.s32.totalorder %s143, %s144
    %p155 = scmp.eq.s32.totalorder %s23, 0
    %p156 = por %p154, %p155
    %p157 = scmp.ne.s32.totalorder %s143, %s144
    %p158 = scmp.eq.s32.totalorder %s24, 1
    %p159 = por %p157, %p158
    %p161 = scmp.ne.s32.totalorder %s144, %s160
    %p162 = scmp.eq.s32.totalorder %s24, 0
    %p163 = por %p161, %p162
    %s164 = ssub.s32 %s18, %s25
    %p165 = scmp.eq.s32.totalorder %s164, 0
    %s167 = sadd.s32 %s166, 1
    %s168 = scalar_select %p165, %s166, %s167
    %p171 = pneg %p165
    %p172 = scmp.eq.s32.totalorder %s18, 1
    %p173 = por %p171, %p172
    %p174 = scmp.ne.s32.totalorder %s166, %s169
    %p175 = scmp.eq.s32.totalorder %s18, 0
    %p176 = por %p174, %p175
    %p177 = scmp.ne.s32.totalorder %s166, %s169
    %p178 = scmp.eq.s32.totalorder %s23, 1
    %p179 = por %p177, %p178
    %p180 = scmp.ne.s32.totalorder %s169, %s170
    %p181 = scmp.eq.s32.totalorder %s23, 0
    %p182 = por %p180, %p181
    %p183 = scmp.ne.s32.totalorder %s169, %s170
    %p184 = scmp.eq.s32.totalorder %s24, 1
    %p185 = por %p183, %p184
    %p187 = scmp.ne.s32.totalorder %s170, %s186
    %p188 = scmp.eq.s32.totalorder %s24, 0
    %p189 = por %p187, %p188
    %p190 = scmp.le.s32.totalorder 1, %s18
    %p191 = scmp.lt.s32.totalorder %s18, 3
    %p192 = pnand %p190, %p191
    %p193 = pneg %p192
    // Predicated region
    $region9: #{patch_mlp_grouped.1} parent=5 // pred_check
      _
    $region10: #{patch_mlp_grouped.1} parent=5 // pred_check_branch
      %195 = sbr.rel (%p192) target = $region12
    $region11: #{patch_mlp_grouped.1} parent=5 // pred_region
      %s196 = ssub.s32 %s18, 1
    $region12: #{patch_mlp_grouped.1} parent=5 // pred_fallthru
      _
    %p197 = scmp.lt.s32.totalorder %s18, 2
    // Predicated region
    $region13: #{patch_mlp_grouped.1} parent=5 // pred_check
      %p198 = pneg %p197
    $region14: #{patch_mlp_grouped.1} parent=5 // pred_check_branch
      %200 = sbr.rel (%p198) target = $region16
    $region15: #{patch_mlp_grouped.1} parent=5 // pred_region
      // Predicated region
      $region17: #{patch_mlp_grouped.1} parent=15 // pred_check
        %p201 = pneg %p38
      $region18: #{patch_mlp_grouped.1} parent=15 // pred_check_branch
        %203 = sbr.rel (%p201) target = $region20
      $region19: #{patch_mlp_grouped.1} parent=15 // pred_region
        %s204 = smul.u32 64, %s18
        %p205 = scmp.lt.s32.totalorder %s204, 127
        %s206 = scalar_select %p205, %s204, 127
        %s207 = smul.addr %s206, 4
        %s208 = scalar_lea.vmem %s1, %s207
        %s209 = smul.u32 64, %s18
      $region20: #{patch_mlp_grouped.1} parent=15 // pred_fallthru
        _
      // Predicated region
      $region21: #{patch_mlp_grouped.1} parent=15 // pred_check
        %p210 = pneg %p66
      $region22: #{patch_mlp_grouped.1} parent=15 // pred_check_branch
        %212 = sbr.rel (%p210) target = $region24
      $region23: #{patch_mlp_grouped.1} parent=15 // pred_region
        %s213 = sld [smem:[#allocation3 + %s18]]
        %p214 = scmp.lt.s32.totalorder %s213, 1
        %s215 = scalar_select %p214, %s213, 1
        %s216 = smul.addr %s215, 16
        %s217 = smul.addr %s216, 4
        %s218 = scalar_lea.vmem %s2, %s217
        %s219 = sld [smem:[#allocation3 + %s18]]
      $region24: #{patch_mlp_grouped.1} parent=15 // pred_fallthru
        _
      // Predicated region
      $region25: #{patch_mlp_grouped.1} parent=15 // pred_check
        %p220 = pneg %p94
      $region26: #{patch_mlp_grouped.1} parent=15 // pred_check_branch
        %222 = sbr.rel (%p220) target = $region28
      $region27: #{patch_mlp_grouped.1} parent=15 // pred_region
        %s223 = sld [smem:[#allocation3 + %s18]]
        %p224 = scmp.lt.s32.totalorder %s223, 1
        %s225 = scalar_select %p224, %s223, 1
        %s226 = scalar_lea.vmem %s3, %s225
        %s227 = sld [smem:[#allocation3 + %s18]]
      $region28: #{patch_mlp_grouped.1} parent=15 // pred_fallthru
        _
      // Predicated region
      $region29: #{patch_mlp_grouped.1} parent=15 // pred_check
        %p228 = pneg %p122
      $region30: #{patch_mlp_grouped.1} parent=15 // pred_check_branch
        %230 = sbr.rel (%p228) target = $region32
      $region31: #{patch_mlp_grouped.1} parent=15 // pred_region
        %s231 = sld [smem:[#allocation3 + %s18]]
        %p232 = scmp.lt.s32.totalorder %s231, 1
        %s233 = scalar_select %p232, %s231, 1
        %s234 = smul.addr %s233, 16
        %s235 = smul.addr %s234, 4
        %s236 = scalar_lea.vmem %s4, %s235
        %s237 = sld [smem:[#allocation3 + %s18]]
      $region32: #{patch_mlp_grouped.1} parent=15 // pred_fallthru
        _
      // Predicated region
      $region33: #{patch_mlp_grouped.1} parent=15 // pred_check
        %p238 = pneg %p150
      $region34: #{patch_mlp_grouped.1} parent=15 // pred_check_branch
        %240 = sbr.rel (%p238) target = $region36
      $region35: #{patch_mlp_grouped.1} parent=15 // pred_region
        %s241 = sld [smem:[#allocation3 + %s18]]
        %p242 = scmp.lt.s32.totalorder %s241, 1
        %s243 = scalar_select %p242, %s241, 1
        %s244 = scalar_lea.vmem %s5, %s243
        %s245 = sld [smem:[#allocation3 + %s18]]
      $region36: #{patch_mlp_grouped.1} parent=15 // pred_fallthru
        _
    $region16: #{patch_mlp_grouped.1} parent=5 // pred_fallthru
      _
    %p246 = scmp.le.s32.totalorder 1, %s18
    %p247 = scmp.lt.s32.totalorder %s18, 3
    %p248 = pnand %p246, %p247
    %p249 = pneg %p248
    // Predicated region
    $region37: #{patch_mlp_grouped.1} parent=5 // pred_check
      _
    $region38: #{patch_mlp_grouped.1} parent=5 // pred_check_branch
      %251 = sbr.rel (%p248) target = $region40
    $region39: #{patch_mlp_grouped.1} parent=5 // pred_region
      %s252 = ssub.s32 %s18, 1
      %s253 = smul.u32 64, %s23
      %p254 = scmp.lt.s32.totalorder %s253, 127
      %s255 = scalar_select %p254, %s253, 127
      %s256 = smul.addr %s255, 4
      %s257 = scalar_lea.vmem %s1, %s256
      %p258 = pneg %p44
      %p259 = pneg %p41
      %s260 = sld [smem:[#allocation3 + %s23]]
      %p261 = scmp.lt.s32.totalorder %s260, 1
      %s262 = scalar_select %p261, %s260, 1
      %s263 = smul.addr %s262, 16
      %s264 = smul.addr %s263, 4
      %s265 = scalar_lea.vmem %s2, %s264
      %p266 = pneg %p72
      %p267 = pneg %p69
      %s268 = sld [smem:[#allocation3 + %s23]]
      %p269 = scmp.lt.s32.totalorder %s268, 1
      %s270 = scalar_select %p269, %s268, 1
      %s271 = scalar_lea.vmem %s3, %s270
      %p272 = pneg %p100
      %p273 = pneg %p97
      %s274 = sld [smem:[#allocation3 + %s23]]
      %p275 = scmp.lt.s32.totalorder %s274, 1
      %s276 = scalar_select %p275, %s274, 1
      %s277 = smul.addr %s276, 16
      %s278 = smul.addr %s277, 4
      %s279 = scalar_lea.vmem %s4, %s278
      %p280 = pneg %p128
      %p281 = pneg %p125
      %s282 = sld [smem:[#allocation3 + %s23]]
      %p283 = scmp.lt.s32.totalorder %s282, 1
      %s284 = scalar_select %p283, %s282, 1
      %s285 = scalar_lea.vmem %s5, %s284
      %p286 = pneg %p156
      %p287 = pneg %p153
      %p288 = pneg %p182
      %p289 = pneg %p179
      %s290 = smul.u32 64, %s23
      %p291 = scmp.lt.s32.totalorder %s290, 127
      %s292 = scalar_select %p291, %s290, 127
      %s293 = smul.addr %s292, 4
      %s294 = scalar_lea.vmem %s6, %s293
      %s295 = smul.u32 64, %s23
      %p296 = scmp.lt.s32.totalorder %s295, 127
      %s297 = scalar_select %p296, %s295, 127
      %s298 = smul.addr %s297, 4
      %s299 = scalar_lea.vmem %s1, %s298
      %s300 = smul.u32 64, %s23
      %s301 = sld [smem:[#allocation3 + %s23]]
      %p302 = scmp.lt.s32.totalorder %s301, 1
      %s303 = scalar_select %p302, %s301, 1
      %s304 = smul.addr %s303, 16
      %s305 = smul.addr %s304, 4
      %s306 = scalar_lea.vmem %s2, %s305
      %s307 = sld [smem:[#allocation3 + %s23]]
      %s308 = sld [smem:[#allocation3 + %s23]]
      %p309 = scmp.lt.s32.totalorder %s308, 1
      %s310 = scalar_select %p309, %s308, 1
      %s311 = scalar_lea.vmem %s3, %s310
      %s312 = sld [smem:[#allocation3 + %s23]]
      %s313 = sld [smem:[#allocation3 + %s23]]
      %p314 = scmp.lt.s32.totalorder %s313, 1
      %s315 = scalar_select %p314, %s313, 1
      %s316 = smul.addr %s315, 16
      %s317 = smul.addr %s316, 4
      %s318 = scalar_lea.vmem %s4, %s317
      %s319 = sld [smem:[#allocation3 + %s23]]
      %s320 = sld [smem:[#allocation3 + %s23]]
      %p321 = scmp.lt.s32.totalorder %s320, 1
      %s322 = scalar_select %p321, %s320, 1
      %s323 = scalar_lea.vmem %s5, %s322
      %s324 = sld [smem:[#allocation3 + %s23]]
      %s325 = smul.u32 64, %s23
      %p326 = scmp.lt.s32.totalorder %s325, 127
      %s327 = scalar_select %p326, %s325, 127
      %s328 = smul.addr %s327, 4
      %s329 = scalar_lea.vmem %s6, %s328
      %s330 = smul.u32 64, %s23
      %v332 = vld [vmem:[%s299] sm:$0xf]
      %v333 = vld [vmem:[%s299 + $0x4] sm:$0xf]
      %v334 = vld [vmem:[%s299 + $0x8] sm:$0xf]
      %v335 = vld [vmem:[%s299 + $0xc] sm:$0xf]
      %v336 = vld [vmem:[%s299 + $0x10] sm:$0xf]
      %v337 = vld [vmem:[%s299 + $0x14] sm:$0xf]
      %v338 = vld [vmem:[%s299 + $0x18] sm:$0xf]
      %v339 = vld [vmem:[%s299 + $0x1c] sm:$0xf]
      %v340 = vld [vmem:[%s299 + $0x20] sm:$0xf]
      %v341 = vld [vmem:[%s299 + $0x24] sm:$0xf]
      %v342 = vld [vmem:[%s299 + $0x28] sm:$0xf]
      %v343 = vld [vmem:[%s299 + $0x2c] sm:$0xf]
      %v344 = vld [vmem:[%s299 + $0x30] sm:$0xf]
      %v345 = vld [vmem:[%s299 + $0x34] sm:$0xf]
      %v346 = vld [vmem:[%s299 + $0x38] sm:$0xf]
      %v347 = vld [vmem:[%s299 + $0x3c] sm:$0xf]
      %v348 = vld [vmem:[%s299 + $0x40] sm:$0xf]
      %v349 = vld [vmem:[%s299 + $0x44] sm:$0xf]
      %v350 = vld [vmem:[%s299 + $0x48] sm:$0xf]
      %v351 = vld [vmem:[%s299 + $0x4c] sm:$0xf]
      %v352 = vld [vmem:[%s299 + $0x50] sm:$0xf]
      %v353 = vld [vmem:[%s299 + $0x54] sm:$0xf]
      %v354 = vld [vmem:[%s299 + $0x58] sm:$0xf]
      %v355 = vld [vmem:[%s299 + $0x5c] sm:$0xf]
      %v356 = vld [vmem:[%s299 + $0x60] sm:$0xf]
      %v357 = vld [vmem:[%s299 + $0x64] sm:$0xf]
      %v358 = vld [vmem:[%s299 + $0x68] sm:$0xf]
      %v359 = vld [vmem:[%s299 + $0x6c] sm:$0xf]
      %v360 = vld [vmem:[%s299 + $0x70] sm:$0xf]
      %v361 = vld [vmem:[%s299 + $0x74] sm:$0xf]
      %v362 = vld [vmem:[%s299 + $0x78] sm:$0xf]
      %v363 = vld [vmem:[%s299 + $0x7c] sm:$0xf]
      %v364 = vld [vmem:[%s299 + $0x80] sm:$0xf]
      %v365 = vld [vmem:[%s299 + $0x84] sm:$0xf]
      %v366 = vld [vmem:[%s299 + $0x88] sm:$0xf]
      %v367 = vld [vmem:[%s299 + $0x8c] sm:$0xf]
      %v368 = vld [vmem:[%s299 + $0x90] sm:$0xf]
      %v369 = vld [vmem:[%s299 + $0x94] sm:$0xf]
      %v370 = vld [vmem:[%s299 + $0x98] sm:$0xf]
      %v371 = vld [vmem:[%s299 + $0x9c] sm:$0xf]
      %v372 = vld [vmem:[%s299 + $0xa0] sm:$0xf]
      %v373 = vld [vmem:[%s299 + $0xa4] sm:$0xf]
      %v374 = vld [vmem:[%s299 + $0xa8] sm:$0xf]
      %v375 = vld [vmem:[%s299 + $0xac] sm:$0xf]
      %v376 = vld [vmem:[%s299 + $0xb0] sm:$0xf]
      %v377 = vld [vmem:[%s299 + $0xb4] sm:$0xf]
      %v378 = vld [vmem:[%s299 + $0xb8] sm:$0xf]
      %v379 = vld [vmem:[%s299 + $0xbc] sm:$0xf]
      %v380 = vld [vmem:[%s299 + $0xc0] sm:$0xf]
      %v381 = vld [vmem:[%s299 + $0xc4] sm:$0xf]
      %v382 = vld [vmem:[%s299 + $0xc8] sm:$0xf]
      %v383 = vld [vmem:[%s299 + $0xcc] sm:$0xf]
      %v384 = vld [vmem:[%s299 + $0xd0] sm:$0xf]
      %v385 = vld [vmem:[%s299 + $0xd4] sm:$0xf]
      %v386 = vld [vmem:[%s299 + $0xd8] sm:$0xf]
      %v387 = vld [vmem:[%s299 + $0xdc] sm:$0xf]
      %v388 = vld [vmem:[%s299 + $0xe0] sm:$0xf]
      %v389 = vld [vmem:[%s299 + $0xe4] sm:$0xf]
      %v390 = vld [vmem:[%s299 + $0xe8] sm:$0xf]
      %v391 = vld [vmem:[%s299 + $0xec] sm:$0xf]
      %v392 = vld [vmem:[%s299 + $0xf0] sm:$0xf]
      %v393 = vld [vmem:[%s299 + $0xf4] sm:$0xf]
      %v394 = vld [vmem:[%s299 + $0xf8] sm:$0xf]
      %v395 = vld [vmem:[%s299 + $0xfc] sm:$0xf]
      %v396 = vld [vmem:[%s306] sm:$0xf]
      %v397 = vld [vmem:[%s306 + $0x4] sm:$0xf]
      %v398 = vld [vmem:[%s306 + $0x8] sm:$0xf]
      %v399 = vld [vmem:[%s306 + $0xc] sm:$0xf]
      %v400 = vld [vmem:[%s306 + $0x10] sm:$0xf]
      %v401 = vld [vmem:[%s306 + $0x14] sm:$0xf]
      %v402 = vld [vmem:[%s306 + $0x18] sm:$0xf]
      %v403 = vld [vmem:[%s306 + $0x1c] sm:$0xf]
      %v404 = vld [vmem:[%s306 + $0x20] sm:$0xf]
      %v405 = vld [vmem:[%s306 + $0x24] sm:$0xf]
      %v406 = vld [vmem:[%s306 + $0x28] sm:$0xf]
      %v407 = vld [vmem:[%s306 + $0x2c] sm:$0xf]
      %v408 = vld [vmem:[%s306 + $0x30] sm:$0xf]
      %v409 = vld [vmem:[%s306 + $0x34] sm:$0xf]
      %v410 = vld [vmem:[%s306 + $0x38] sm:$0xf]
      %v411 = vld [vmem:[%s306 + $0x3c] sm:$0xf]
      %v412 = vld [vmem:[%s311] sm:$0x1]
      %v414 = vlaneseq
      %v415 = vshrl.u32 %v414, 7
      %v416 = vsub.s32 0, %v415
      %v417 = vrot.slane %v412, %v416
      %v483 = vunpack.c.l.b16 %v332
      %v484 = vunpack.c.l.b16 %v333
      %v485 = vunpack.c.l.b16 %v334
      %v486 = vunpack.c.l.b16 %v335
      %v487 = vunpack.c.l.b16 %v336
      %v488 = vunpack.c.l.b16 %v337
      %v489 = vunpack.c.l.b16 %v338
      %v490 = vunpack.c.l.b16 %v339
      %v491 = vunpack.c.l.b16 %v340
      %v492 = vunpack.c.l.b16 %v341
      %v493 = vunpack.c.l.b16 %v342
      %v494 = vunpack.c.l.b16 %v343
      %v495 = vunpack.c.l.b16 %v344
      %v496 = vunpack.c.l.b16 %v345
      %v497 = vunpack.c.l.b16 %v346
      %v498 = vunpack.c.l.b16 %v347
      %v499 = vunpack.c.l.b16 %v348
      %v500 = vunpack.c.l.b16 %v349
      %v501 = vunpack.c.l.b16 %v350
      %v502 = vunpack.c.l.b16 %v351
      %v503 = vunpack.c.l.b16 %v352
      %v504 = vunpack.c.l.b16 %v353
      %v505 = vunpack.c.l.b16 %v354
      %v506 = vunpack.c.l.b16 %v355
      %v507 = vunpack.c.l.b16 %v356
      %v508 = vunpack.c.l.b16 %v357
      %v509 = vunpack.c.l.b16 %v358
      %v510 = vunpack.c.l.b16 %v359
      %v511 = vunpack.c.l.b16 %v360
      %v512 = vunpack.c.l.b16 %v361
      %v513 = vunpack.c.l.b16 %v362
      %v514 = vunpack.c.l.b16 %v363
      %v515 = vunpack.c.l.b16 %v364
      %v516 = vunpack.c.l.b16 %v365
      %v517 = vunpack.c.l.b16 %v366
      %v518 = vunpack.c.l.b16 %v367
      %v519 = vunpack.c.l.b16 %v368
      %v520 = vunpack.c.l.b16 %v369
      %v521 = vunpack.c.l.b16 %v370
      %v522 = vunpack.c.l.b16 %v371
      %v523 = vunpack.c.l.b16 %v372
      %v524 = vunpack.c.l.b16 %v373
      %v525 = vunpack.c.l.b16 %v374
      %v526 = vunpack.c.l.b16 %v375
      %v527 = vunpack.c.l.b16 %v376
      %v528 = vunpack.c.l.b16 %v377
      %v529 = vunpack.c.l.b16 %v378
      %v530 = vunpack.c.l.b16 %v379
      %v531 = vunpack.c.l.b16 %v380
      %v532 = vunpack.c.l.b16 %v381
      %v533 = vunpack.c.l.b16 %v382
      %v534 = vunpack.c.l.b16 %v383
      %v535 = vunpack.c.l.b16 %v384
      %v536 = vunpack.c.l.b16 %v385
      %v537 = vunpack.c.l.b16 %v386
      %v538 = vunpack.c.l.b16 %v387
      %v539 = vunpack.c.l.b16 %v388
      %v540 = vunpack.c.l.b16 %v389
      %v541 = vunpack.c.l.b16 %v390
      %v542 = vunpack.c.l.b16 %v391
      %v543 = vunpack.c.l.b16 %v392
      %v544 = vunpack.c.l.b16 %v393
      %v545 = vunpack.c.l.b16 %v394
      %v546 = vunpack.c.l.b16 %v395
      %v547 = vpack.c.b16 %v484, %v483
      %v548 = vpack.c.b16 %v486, %v485
      %v549 = vpack.c.b16 %v488, %v487
      %v550 = vpack.c.b16 %v490, %v489
      %v551 = vpack.c.b16 %v492, %v491
      %v552 = vpack.c.b16 %v494, %v493
      %v553 = vpack.c.b16 %v496, %v495
      %v554 = vpack.c.b16 %v498, %v497
      %v555 = vpack.c.b16 %v500, %v499
      %v556 = vpack.c.b16 %v502, %v501
      %v557 = vpack.c.b16 %v504, %v503
      %v558 = vpack.c.b16 %v506, %v505
      %v559 = vpack.c.b16 %v508, %v507
      %v560 = vpack.c.b16 %v510, %v509
      %v561 = vpack.c.b16 %v512, %v511
      %v562 = vpack.c.b16 %v514, %v513
      %v563 = vpack.c.b16 %v516, %v515
      %v564 = vpack.c.b16 %v518, %v517
      %v565 = vpack.c.b16 %v520, %v519
      %v566 = vpack.c.b16 %v522, %v521
      %v567 = vpack.c.b16 %v524, %v523
      %v568 = vpack.c.b16 %v526, %v525
      %v569 = vpack.c.b16 %v528, %v527
      %v570 = vpack.c.b16 %v530, %v529
      %v571 = vpack.c.b16 %v532, %v531
      %v572 = vpack.c.b16 %v534, %v533
      %v573 = vpack.c.b16 %v536, %v535
      %v574 = vpack.c.b16 %v538, %v537
      %v575 = vpack.c.b16 %v540, %v539
      %v576 = vpack.c.b16 %v542, %v541
      %v577 = vpack.c.b16 %v544, %v543
      %v578 = vpack.c.b16 %v546, %v545
      %v627 = vunpack.c.l.b16 %v396
      %v628 = vunpack.c.l.b16 %v397
      %v629 = vunpack.c.l.b16 %v398
      %v630 = vunpack.c.l.b16 %v399
      %v631 = vunpack.c.l.b16 %v400
      %v632 = vunpack.c.l.b16 %v401
      %v633 = vunpack.c.l.b16 %v402
      %v634 = vunpack.c.l.b16 %v403
      %v635 = vunpack.c.l.b16 %v404
      %v636 = vunpack.c.l.b16 %v405
      %v637 = vunpack.c.l.b16 %v406
      %v638 = vunpack.c.l.b16 %v407
      %v639 = vunpack.c.l.b16 %v408
      %v640 = vunpack.c.l.b16 %v409
      %v641 = vunpack.c.l.b16 %v410
      %v642 = vunpack.c.l.b16 %v411
      %v643 = vpack.c.b16 %v628, %v627
      %v644 = vpack.c.b16 %v630, %v629
      %v645 = vpack.c.b16 %v632, %v631
      %v646 = vpack.c.b16 %v634, %v633
      %v647 = vpack.c.b16 %v636, %v635
      %v648 = vpack.c.b16 %v638, %v637
      %v649 = vpack.c.b16 %v640, %v639
      %v650 = vpack.c.b16 %v642, %v641
      %659 = vmatprep.subr.bf16.mxu0 0
      %660 = vmatpush1.bf16.msra.mxu0 %v643
      %661 = vmatprep.subr.bf16.mxu0 0
      %662 = vmatpush1.bf16.msra.mxu0 %v644
      %663 = vmatprep.subr.bf16.mxu0 0
      %664 = vmatpush1.bf16.msra.mxu0 %v645
      %665 = vmatprep.subr.bf16.mxu0 0
      %666 = vmatpush1.bf16.msra.mxu0 %v646
      %667 = vmatprep.subr.bf16.mxu0 0
      %668 = vmatpush1.bf16.msra.mxu0 %v647
      %669 = vmatprep.subr.bf16.mxu0 0
      %670 = vmatpush1.bf16.msra.mxu0 %v648
      %671 = vmatprep.subr.bf16.mxu0 0
      %672 = vmatpush1.bf16.msra.mxu0 %v649
      %673 = vmatprep.subr.bf16.mxu0 0
      %674 = vmatpush1.bf16.msra.mxu0 %v650
      %675 = vmatprep.subr.bf16.mxu0 0
      %676 = vmatpush1.bf16.msra.mxu0 0
      %677 = vmatprep.subr.bf16.mxu0 0
      %678 = vmatpush1.bf16.msra.mxu0 0
      %679 = vmatprep.subr.bf16.mxu0 0
      %680 = vmatpush1.bf16.msra.mxu0 0
      %681 = vmatprep.subr.bf16.mxu0 0
      %682 = vmatpush1.bf16.msra.mxu0 0
      %683 = vmatprep.subr.bf16.mxu0 0
      %684 = vmatpush1.bf16.msra.mxu0 0
      %685 = vmatprep.subr.bf16.mxu0 0
      %686 = vmatpush1.bf16.msra.mxu0 0
      %687 = vmatprep.subr.bf16.mxu0 0
      %688 = vmatpush1.bf16.msra.mxu0 0
      %689 = vmatprep.subr.bf16.mxu0 0
      %690 = vmatpush1.bf16.msra.mxu0 0
      %691 = vmatprep.mubr.bf16.mxu0 0
      %692 = vmatmul.mubr.bf16.gmra.mrb[0].mxu0 %v547
      %v693 = vpop.f32.mrb[0].mxu0
      %v694 = vadd.f32 %v417, %v693
      %v695 = vpop.f32.mrb[0].mxu0
      %v696 = vpop.f32.mrb[0].mxu0
      %v697 = vadd.f32 %v417, %v696
      %v698 = vpop.f32.mrb[0].mxu0
      %699 = vmatprep.mubr.bf16.mxu0 0
      %700 = vmatmul.mubr.bf16.gmra.mrb[0].mxu0 %v548
      %v701 = vpop.f32.mrb[0].mxu0
      %v702 = vadd.f32 %v417, %v701
      %v703 = vpop.f32.mrb[0].mxu0
      %v704 = vpop.f32.mrb[0].mxu0
      %v705 = vadd.f32 %v417, %v704
      %v706 = vpop.f32.mrb[0].mxu0
      %707 = vmatprep.mubr.bf16.mxu0 0
      %708 = vmatmul.mubr.bf16.gmra.mrb[0].mxu0 %v549
      %v709 = vpop.f32.mrb[0].mxu0
      %v710 = vadd.f32 %v417, %v709
      %v711 = vpop.f32.mrb[0].mxu0
      %v712 = vpop.f32.mrb[0].mxu0
      %v713 = vadd.f32 %v417, %v712
      %v714 = vpop.f32.mrb[0].mxu0
      %715 = vmatprep.mubr.bf16.mxu0 0
      %716 = vmatmul.mubr.bf16.gmra.mrb[0].mxu0 %v550
      %v717 = vpop.f32.mrb[0].mxu0
      %v718 = vadd.f32 %v417, %v717
      %v719 = vpop.f32.mrb[0].mxu0
      %v720 = vpop.f32.mrb[0].mxu0
      %v721 = vadd.f32 %v417, %v720
      %v722 = vpop.f32.mrb[0].mxu0
      %723 = vmatprep.mubr.bf16.mxu0 0
      %724 = vmatmul.mubr.bf16.gmra.mrb[0].mxu0 %v551
      %v725 = vpop.f32.mrb[0].mxu0
      %v726 = vadd.f32 %v417, %v725
      %v727 = vpop.f32.mrb[0].mxu0
      %v728 = vpop.f32.mrb[0].mxu0
      %v729 = vadd.f32 %v417, %v728
      %v730 = vpop.f32.mrb[0].mxu0
      %731 = vmatprep.mubr.bf16.mxu0 0
      %732 = vmatmul.mubr.bf16.gmra.mrb[0].mxu0 %v552
      %v733 = vpop.f32.mrb[0].mxu0
      %v734 = vadd.f32 %v417, %v733
      %v735 = vpop.f32.mrb[0].mxu0
      %v736 = vpop.f32.mrb[0].mxu0
      %v737 = vadd.f32 %v417, %v736
      %v738 = vpop.f32.mrb[0].mxu0
      %739 = vmatprep.mubr.bf16.mxu0 0
      %740 = vmatmul.mubr.bf16.gmra.mrb[0].mxu0 %v553
      %v741 = vpop.f32.mrb[0].mxu0
      %v742 = vadd.f32 %v417, %v741
      %v743 = vpop.f32.mrb[0].mxu0
      %v744 = vpop.f32.mrb[0].mxu0
      %v745 = vadd.f32 %v417, %v744
      %v746 = vpop.f32.mrb[0].mxu0
      %747 = vmatprep.mubr.bf16.mxu0 0
      %748 = vmatmul.mubr.bf16.gmra.mrb[0].mxu0 %v554
      %v749 = vpop.f32.mrb[0].mxu0
      %v750 = vadd.f32 %v417, %v749
      %v751 = vpop.f32.mrb[0].mxu0
      %v752 = vpop.f32.mrb[0].mxu0
      %v753 = vadd.f32 %v417, %v752
      %v754 = vpop.f32.mrb[0].mxu0
      %755 = vmatprep.mubr.bf16.mxu0 0
      %756 = vmatmul.mubr.bf16.gmra.mrb[0].mxu0 %v555
      %v757 = vpop.f32.mrb[0].mxu0
      %v758 = vadd.f32 %v417, %v757
      %v759 = vpop.f32.mrb[0].mxu0
      %v760 = vpop.f32.mrb[0].mxu0
      %v761 = vadd.f32 %v417, %v760
      %v762 = vpop.f32.mrb[0].mxu0
      %763 = vmatprep.mubr.bf16.mxu0 0
      %764 = vmatmul.mubr.bf16.gmra.mrb[0].mxu0 %v556
      %v765 = vpop.f32.mrb[0].mxu0
      %v766 = vadd.f32 %v417, %v765
      %v767 = vpop.f32.mrb[0].mxu0
      %v768 = vpop.f32.mrb[0].mxu0
      %v769 = vadd.f32 %v417, %v768
      %v770 = vpop.f32.mrb[0].mxu0
      %771 = vmatprep.mubr.bf16.mxu0 0
      %772 = vmatmul.mubr.bf16.gmra.mrb[0].mxu0 %v557
      %v773 = vpop.f32.mrb[0].mxu0
      %v774 = vadd.f32 %v417, %v773
      %v775 = vpop.f32.mrb[0].mxu0
      %v776 = vpop.f32.mrb[0].mxu0
      %v777 = vadd.f32 %v417, %v776
      %v778 = vpop.f32.mrb[0].mxu0
      %779 = vmatprep.mubr.bf16.mxu0 0
      %780 = vmatmul.mubr.bf16.gmra.mrb[0].mxu0 %v558
      %v781 = vpop.f32.mrb[0].mxu0
      %v782 = vadd.f32 %v417, %v781
      %v783 = vpop.f32.mrb[0].mxu0
      %v784 = vpop.f32.mrb[0].mxu0
      %v785 = vadd.f32 %v417, %v784
      %v786 = vpop.f32.mrb[0].mxu0
      %787 = vmatprep.mubr.bf16.mxu0 0
      %788 = vmatmul.mubr.bf16.gmra.mrb[0].mxu0 %v559
      %v789 = vpop.f32.mrb[0].mxu0
      %v790 = vadd.f32 %v417, %v789
      %v791 = vpop.f32.mrb[0].mxu0
      %v792 = vpop.f32.mrb[0].mxu0
      %v793 = vadd.f32 %v417, %v792
      %v794 = vpop.f32.mrb[0].mxu0
      %795 = vmatprep.mubr.bf16.mxu0 0
      %796 = vmatmul.mubr.bf16.gmra.mrb[0].mxu0 %v560
      %v797 = vpop.f32.mrb[0].mxu0
      %v798 = vadd.f32 %v417, %v797
      %v799 = vpop.f32.mrb[0].mxu0
      %v800 = vpop.f32.mrb[0].mxu0
      %v801 = vadd.f32 %v417, %v800
      %v802 = vpop.f32.mrb[0].mxu0
      %803 = vmatprep.mubr.bf16.mxu0 0
      %804 = vmatmul.mubr.bf16.gmra.mrb[0].mxu0 %v561
      %v805 = vpop.f32.mrb[0].mxu0
      %v806 = vadd.f32 %v417, %v805
      %v807 = vpop.f32.mrb[0].mxu0
      %v808 = vpop.f32.mrb[0].mxu0
      %v809 = vadd.f32 %v417, %v808
      %v810 = vpop.f32.mrb[0].mxu0
      %811 = vmatprep.mubr.bf16.mxu0 0
      %812 = vmatmul.mubr.bf16.gmra.mrb[0].mxu0 %v562
      %v813 = vpop.f32.mrb[0].mxu0
      %v814 = vadd.f32 %v417, %v813
      %v815 = vpop.f32.mrb[0].mxu0
      %v816 = vpop.f32.mrb[0].mxu0
      %v817 = vadd.f32 %v417, %v816
      %v818 = vpop.f32.mrb[0].mxu0
      %819 = vmatprep.mubr.bf16.mxu0 0
      %820 = vmatmul.mubr.bf16.gmra.mrb[0].mxu0 %v563
      %v821 = vpop.f32.mrb[0].mxu0
      %v822 = vadd.f32 %v417, %v821
      %v823 = vpop.f32.mrb[0].mxu0
      %v824 = vpop.f32.mrb[0].mxu0
      %v825 = vadd.f32 %v417, %v824
      %v826 = vpop.f32.mrb[0].mxu0
      %827 = vmatprep.mubr.bf16.mxu0 0
      %828 = vmatmul.mubr.bf16.gmra.mrb[0].mxu0 %v564
      %v829 = vpop.f32.mrb[0].mxu0
      %v830 = vadd.f32 %v417, %v829
      %v831 = vpop.f32.mrb[0].mxu0
      %v832 = vpop.f32.mrb[0].mxu0
      %v833 = vadd.f32 %v417, %v832
      %v834 = vpop.f32.mrb[0].mxu0
      %835 = vmatprep.mubr.bf16.mxu0 0
      %836 = vmatmul.mubr.bf16.gmra.mrb[0].mxu0 %v565
      %v837 = vpop.f32.mrb[0].mxu0
      %v838 = vadd.f32 %v417, %v837
      %v839 = vpop.f32.mrb[0].mxu0
      %v840 = vpop.f32.mrb[0].mxu0
      %v841 = vadd.f32 %v417, %v840
      %v842 = vpop.f32.mrb[0].mxu0
      %843 = vmatprep.mubr.bf16.mxu0 0
      %844 = vmatmul.mubr.bf16.gmra.mrb[0].mxu0 %v566
      %v845 = vpop.f32.mrb[0].mxu0
      %v846 = vadd.f32 %v417, %v845
      %v847 = vpop.f32.mrb[0].mxu0
      %v848 = vpop.f32.mrb[0].mxu0
      %v849 = vadd.f32 %v417, %v848
      %v850 = vpop.f32.mrb[0].mxu0
      %851 = vmatprep.mubr.bf16.mxu0 0
      %852 = vmatmul.mubr.bf16.gmra.mrb[0].mxu0 %v567
      %v853 = vpop.f32.mrb[0].mxu0
      %v854 = vadd.f32 %v417, %v853
      %v855 = vpop.f32.mrb[0].mxu0
      %v856 = vpop.f32.mrb[0].mxu0
      %v857 = vadd.f32 %v417, %v856
      %v858 = vpop.f32.mrb[0].mxu0
      %859 = vmatprep.mubr.bf16.mxu0 0
      %860 = vmatmul.mubr.bf16.gmra.mrb[0].mxu0 %v568
      %v861 = vpop.f32.mrb[0].mxu0
      %v862 = vadd.f32 %v417, %v861
      %v863 = vpop.f32.mrb[0].mxu0
      %v864 = vpop.f32.mrb[0].mxu0
      %v865 = vadd.f32 %v417, %v864
      %v866 = vpop.f32.mrb[0].mxu0
      %867 = vmatprep.mubr.bf16.mxu0 0
      %868 = vmatmul.mubr.bf16.gmra.mrb[0].mxu0 %v569
      %v869 = vpop.f32.mrb[0].mxu0
      %v870 = vadd.f32 %v417, %v869
      %v871 = vpop.f32.mrb[0].mxu0
      %v872 = vpop.f32.mrb[0].mxu0
      %v873 = vadd.f32 %v417, %v872
      %v874 = vpop.f32.mrb[0].mxu0
      %875 = vmatprep.mubr.bf16.mxu0 0
      %876 = vmatmul.mubr.bf16.gmra.mrb[0].mxu0 %v570
      %v877 = vpop.f32.mrb[0].mxu0
      %v878 = vadd.f32 %v417, %v877
      %v879 = vpop.f32.mrb[0].mxu0
      %v880 = vpop.f32.mrb[0].mxu0
      %v881 = vadd.f32 %v417, %v880
      %v882 = vpop.f32.mrb[0].mxu0
      %883 = vmatprep.mubr.bf16.mxu0 0
      %884 = vmatmul.mubr.bf16.gmra.mrb[0].mxu0 %v571
      %v885 = vpop.f32.mrb[0].mxu0
      %v886 = vadd.f32 %v417, %v885
      %v887 = vpop.f32.mrb[0].mxu0
      %v888 = vpop.f32.mrb[0].mxu0
      %v889 = vadd.f32 %v417, %v888
      %v890 = vpop.f32.mrb[0].mxu0
      %891 = vmatprep.mubr.bf16.mxu0 0
      %892 = vmatmul.mubr.bf16.gmra.mrb[0].mxu0 %v572
      %v893 = vpop.f32.mrb[0].mxu0
      %v894 = vadd.f32 %v417, %v893
      %v895 = vpop.f32.mrb[0].mxu0
      %v896 = vpop.f32.mrb[0].mxu0
      %v897 = vadd.f32 %v417, %v896
      %v898 = vpop.f32.mrb[0].mxu0
      %899 = vmatprep.mubr.bf16.mxu0 0
      %900 = vmatmul.mubr.bf16.gmra.mrb[0].mxu0 %v573
      %v901 = vpop.f32.mrb[0].mxu0
      %v902 = vadd.f32 %v417, %v901
      %v903 = vpop.f32.mrb[0].mxu0
      %v904 = vpop.f32.mrb[0].mxu0
      %v905 = vadd.f32 %v417, %v904
      %v906 = vpop.f32.mrb[0].mxu0
      %907 = vmatprep.mubr.bf16.mxu0 0
      %908 = vmatmul.mubr.bf16.gmra.mrb[0].mxu0 %v574
      %v909 = vpop.f32.mrb[0].mxu0
      %v910 = vadd.f32 %v417, %v909
      %v911 = vpop.f32.mrb[0].mxu0
      %v912 = vpop.f32.mrb[0].mxu0
      %v913 = vadd.f32 %v417, %v912
      %v914 = vpop.f32.mrb[0].mxu0
      %915 = vmatprep.mubr.bf16.mxu0 0
      %916 = vmatmul.mubr.bf16.gmra.mrb[0].mxu0 %v575
      %v917 = vpop.f32.mrb[0].mxu0
      %v918 = vadd.f32 %v417, %v917
      %v919 = vpop.f32.mrb[0].mxu0
      %v920 = vpop.f32.mrb[0].mxu0
      %v921 = vadd.f32 %v417, %v920
      %v922 = vpop.f32.mrb[0].mxu0
      %923 = vmatprep.mubr.bf16.mxu0 0
      %924 = vmatmul.mubr.bf16.gmra.mrb[0].mxu0 %v576
      %v925 = vpop.f32.mrb[0].mxu0
      %v926 = vadd.f32 %v417, %v925
      %v927 = vpop.f32.mrb[0].mxu0
      %v928 = vpop.f32.mrb[0].mxu0
      %v929 = vadd.f32 %v417, %v928
      %v930 = vpop.f32.mrb[0].mxu0
      %931 = vmatprep.mubr.bf16.mxu0 0
      %932 = vmatmul.mubr.bf16.gmra.mrb[0].mxu0 %v577
      %v933 = vpop.f32.mrb[0].mxu0
      %v934 = vadd.f32 %v417, %v933
      %v935 = vpop.f32.mrb[0].mxu0
      %v936 = vpop.f32.mrb[0].mxu0
      %v937 = vadd.f32 %v417, %v936
      %v938 = vpop.f32.mrb[0].mxu0
      %939 = vmatprep.mubr.bf16.mxu0 0
      %940 = vmatmul.mubr.bf16.gmra.mrb[0].mxu0 %v578
      %v941 = vpop.f32.mrb[0].mxu0
      %v942 = vadd.f32 %v417, %v941
      %v943 = vpop.f32.mrb[0].mxu0
      %v944 = vpop.f32.mrb[0].mxu0
      %v945 = vadd.f32 %v417, %v944
      %v946 = vpop.f32.mrb[0].mxu0
      %947 = vdwg.mxu0
      %v948 = vmax.f32 %v694, 0.0
      %v949 = vmax.f32 %v697, 0.0
      %v950 = vmax.f32 %v702, 0.0
      %v951 = vmax.f32 %v705, 0.0
      %v952 = vmax.f32 %v710, 0.0
      %v953 = vmax.f32 %v713, 0.0
      %v954 = vmax.f32 %v718, 0.0
      %v955 = vmax.f32 %v721, 0.0
      %v956 = vmax.f32 %v726, 0.0
      %v957 = vmax.f32 %v729, 0.0
      %v958 = vmax.f32 %v734, 0.0
      %v959 = vmax.f32 %v737, 0.0
      %v960 = vmax.f32 %v742, 0.0
      %v961 = vmax.f32 %v745, 0.0
      %v962 = vmax.f32 %v750, 0.0
      %v963 = vmax.f32 %v753, 0.0
      %v964 = vmax.f32 %v758, 0.0
      %v965 = vmax.f32 %v761, 0.0
      %v966 = vmax.f32 %v766, 0.0
      %v967 = vmax.f32 %v769, 0.0
      %v968 = vmax.f32 %v774, 0.0
      %v969 = vmax.f32 %v777, 0.0
      %v970 = vmax.f32 %v782, 0.0
      %v971 = vmax.f32 %v785, 0.0
      %v972 = vmax.f32 %v790, 0.0
      %v973 = vmax.f32 %v793, 0.0
      %v974 = vmax.f32 %v798, 0.0
      %v975 = vmax.f32 %v801, 0.0
      %v976 = vmax.f32 %v806, 0.0
      %v977 = vmax.f32 %v809, 0.0
      %v978 = vmax.f32 %v814, 0.0
      %v979 = vmax.f32 %v817, 0.0
      %v980 = vmax.f32 %v822, 0.0
      %v981 = vmax.f32 %v825, 0.0
      %v982 = vmax.f32 %v830, 0.0
      %v983 = vmax.f32 %v833, 0.0
      %v984 = vmax.f32 %v838, 0.0
      %v985 = vmax.f32 %v841, 0.0
      %v986 = vmax.f32 %v846, 0.0
      %v987 = vmax.f32 %v849, 0.0
      %v988 = vmax.f32 %v854, 0.0
      %v989 = vmax.f32 %v857, 0.0
      %v990 = vmax.f32 %v862, 0.0
      %v991 = vmax.f32 %v865, 0.0
      %v992 = vmax.f32 %v870, 0.0
      %v993 = vmax.f32 %v873, 0.0
      %v994 = vmax.f32 %v878, 0.0
      %v995 = vmax.f32 %v881, 0.0
      %v996 = vmax.f32 %v886, 0.0
      %v997 = vmax.f32 %v889, 0.0
      %v998 = vmax.f32 %v894, 0.0
      %v999 = vmax.f32 %v897, 0.0
      %v1000 = vmax.f32 %v902, 0.0
      %v1001 = vmax.f32 %v905, 0.0
      %v1002 = vmax.f32 %v910, 0.0
      %v1003 = vmax.f32 %v913, 0.0
      %v1004 = vmax.f32 %v918, 0.0
      %v1005 = vmax.f32 %v921, 0.0
      %v1006 = vmax.f32 %v926, 0.0
      %v1007 = vmax.f32 %v929, 0.0
      %v1008 = vmax.f32 %v934, 0.0
      %v1009 = vmax.f32 %v937, 0.0
      %v1010 = vmax.f32 %v942, 0.0
      %v1011 = vmax.f32 %v945, 0.0
      %v1012 = vpack.c.bf16 %v949, %v948
      %v1013 = vpack.c.bf16 %v951, %v950
      %v1014 = vpack.c.bf16 %v953, %v952
      %v1015 = vpack.c.bf16 %v955, %v954
      %v1016 = vpack.c.bf16 %v957, %v956
      %v1017 = vpack.c.bf16 %v959, %v958
      %v1018 = vpack.c.bf16 %v961, %v960
      %v1019 = vpack.c.bf16 %v963, %v962
      %v1020 = vpack.c.bf16 %v965, %v964
      %v1021 = vpack.c.bf16 %v967, %v966
      %v1022 = vpack.c.bf16 %v969, %v968
      %v1023 = vpack.c.bf16 %v971, %v970
      %v1024 = vpack.c.bf16 %v973, %v972
      %v1025 = vpack.c.bf16 %v975, %v974
      %v1026 = vpack.c.bf16 %v977, %v976
      %v1027 = vpack.c.bf16 %v979, %v978
      %v1028 = vpack.c.bf16 %v981, %v980
      %v1029 = vpack.c.bf16 %v983, %v982
      %v1030 = vpack.c.bf16 %v985, %v984
      %v1031 = vpack.c.bf16 %v987, %v986
      %v1032 = vpack.c.bf16 %v989, %v988
      %v1033 = vpack.c.bf16 %v991, %v990
      %v1034 = vpack.c.bf16 %v993, %v992
      %v1035 = vpack.c.bf16 %v995, %v994
      %v1036 = vpack.c.bf16 %v997, %v996
      %v1037 = vpack.c.bf16 %v999, %v998
      %v1038 = vpack.c.bf16 %v1001, %v1000
      %v1039 = vpack.c.bf16 %v1003, %v1002
      %v1040 = vpack.c.bf16 %v1005, %v1004
      %v1041 = vpack.c.bf16 %v1007, %v1006
      %v1042 = vpack.c.bf16 %v1009, %v1008
      %v1043 = vpack.c.bf16 %v1011, %v1010
      %v1044 = vld [vmem:[%s318] sm:$0xf]
      %v1045 = vld [vmem:[%s318 + $0x4] sm:$0xf]
      %v1046 = vld [vmem:[%s318 + $0x8] sm:$0xf]
      %v1047 = vld [vmem:[%s318 + $0xc] sm:$0xf]
      %v1048 = vld [vmem:[%s318 + $0x10] sm:$0xf]
      %v1049 = vld [vmem:[%s318 + $0x14] sm:$0xf]
      %v1050 = vld [vmem:[%s318 + $0x18] sm:$0xf]
      %v1051 = vld [vmem:[%s318 + $0x1c] sm:$0xf]
      %v1052 = vld [vmem:[%s318 + $0x20] sm:$0xf]
      %v1053 = vld [vmem:[%s318 + $0x24] sm:$0xf]
      %v1054 = vld [vmem:[%s318 + $0x28] sm:$0xf]
      %v1055 = vld [vmem:[%s318 + $0x2c] sm:$0xf]
      %v1056 = vld [vmem:[%s318 + $0x30] sm:$0xf]
      %v1057 = vld [vmem:[%s318 + $0x34] sm:$0xf]
      %v1058 = vld [vmem:[%s318 + $0x38] sm:$0xf]
      %v1059 = vld [vmem:[%s318 + $0x3c] sm:$0xf]
      %v1060 = vld [vmem:[%s323] sm:$0x1]
      %v1062 = vlaneseq
      %v1063 = vshrl.u32 %v1062, 7
      %v1064 = vsub.s32 0, %v1063
      %v1065 = vrot.slane %v1060, %v1064
      %v1083 = vunpack.c.l.b16 %v1044
      %v1084 = vunpack.c.l.b16 %v1045
      %v1085 = vunpack.c.l.b16 %v1046
      %v1086 = vunpack.c.l.b16 %v1047
      %v1087 = vunpack.c.l.b16 %v1048
      %v1088 = vunpack.c.l.b16 %v1049
      %v1089 = vunpack.c.l.b16 %v1050
      %v1090 = vunpack.c.l.b16 %v1051
      %v1091 = vunpack.c.l.b16 %v1052
      %v1092 = vunpack.c.l.b16 %v1053
      %v1093 = vunpack.c.l.b16 %v1054
      %v1094 = vunpack.c.l.b16 %v1055
      %v1095 = vunpack.c.l.b16 %v1056
      %v1096 = vunpack.c.l.b16 %v1057
      %v1097 = vunpack.c.l.b16 %v1058
      %v1098 = vunpack.c.l.b16 %v1059
      %v1099 = vpack.c.b16 %v1084, %v1083
      %v1100 = vpack.c.b16 %v1086, %v1085
      %v1101 = vpack.c.b16 %v1088, %v1087
      %v1102 = vpack.c.b16 %v1090, %v1089
      %v1103 = vpack.c.b16 %v1092, %v1091
      %v1104 = vpack.c.b16 %v1094, %v1093
      %v1105 = vpack.c.b16 %v1096, %v1095
      %v1106 = vpack.c.b16 %v1098, %v1097
      %1115 = vmatprep.subr.bf16.mxu0 0
      %1116 = vmatpush1.bf16.msra.mxu0 %v1099
      %1117 = vmatprep.subr.bf16.mxu0 0
      %1118 = vmatpush1.bf16.msra.mxu0 %v1100
      %1119 = vmatprep.subr.bf16.mxu0 0
      %1120 = vmatpush1.bf16.msra.mxu0 %v1101
      %1121 = vmatprep.subr.bf16.mxu0 0
      %1122 = vmatpush1.bf16.msra.mxu0 %v1102
      %1123 = vmatprep.subr.bf16.mxu0 0
      %1124 = vmatpush1.bf16.msra.mxu0 %v1103
      %1125 = vmatprep.subr.bf16.mxu0 0
      %1126 = vmatpush1.bf16.msra.mxu0 %v1104
      %1127 = vmatprep.subr.bf16.mxu0 0
      %1128 = vmatpush1.bf16.msra.mxu0 %v1105
      %1129 = vmatprep.subr.bf16.mxu0 0
      %1130 = vmatpush1.bf16.msra.mxu0 %v1106
      %1131 = vmatprep.subr.bf16.mxu0 0
      %1132 = vmatpush1.bf16.msra.mxu0 0
      %1133 = vmatprep.subr.bf16.mxu0 0
      %1134 = vmatpush1.bf16.msra.mxu0 0
      %1135 = vmatprep.subr.bf16.mxu0 0
      %1136 = vmatpush1.bf16.msra.mxu0 0
      %1137 = vmatprep.subr.bf16.mxu0 0
      %1138 = vmatpush1.bf16.msra.mxu0 0
      %1139 = vmatprep.subr.bf16.mxu0 0
      %1140 = vmatpush1.bf16.msra.mxu0 0
      %1141 = vmatprep.subr.bf16.mxu0 0
      %1142 = vmatpush1.bf16.msra.mxu0 0
      %1143 = vmatprep.subr.bf16.mxu0 0
      %1144 = vmatpush1.bf16.msra.mxu0 0
      %1145 = vmatprep.subr.bf16.mxu0 0
      %1146 = vmatpush1.bf16.msra.mxu0 0
      %1147 = vmatprep.mubr.bf16.mxu0 0
      %1148 = vmatmul.mubr.bf16.gmra.mrb[0].mxu0 %v1012
      %v1149 = vpop.f32.mrb[0].mxu0
      %v1150 = vadd.f32 %v1065, %v1149
      %v1151 = vpop.f32.mrb[0].mxu0
      %v1152 = vpop.f32.mrb[0].mxu0
      %v1153 = vadd.f32 %v1065, %v1152
      %v1154 = vpop.f32.mrb[0].mxu0
      %1155 = vmatprep.mubr.bf16.mxu0 0
      %1156 = vmatmul.mubr.bf16.gmra.mrb[0].mxu0 %v1013
      %v1157 = vpop.f32.mrb[0].mxu0
      %v1158 = vadd.f32 %v1065, %v1157
      %v1159 = vpop.f32.mrb[0].mxu0
      %v1160 = vpop.f32.mrb[0].mxu0
      %v1161 = vadd.f32 %v1065, %v1160
      %v1162 = vpop.f32.mrb[0].mxu0
      %1163 = vmatprep.mubr.bf16.mxu0 0
      %1164 = vmatmul.mubr.bf16.gmra.mrb[0].mxu0 %v1014
      %v1165 = vpop.f32.mrb[0].mxu0
      %v1166 = vadd.f32 %v1065, %v1165
      %v1167 = vpop.f32.mrb[0].mxu0
      %v1168 = vpop.f32.mrb[0].mxu0
      %v1169 = vadd.f32 %v1065, %v1168
      %v1170 = vpop.f32.mrb[0].mxu0
      %1171 = vmatprep.mubr.bf16.mxu0 0
      %1172 = vmatmul.mubr.bf16.gmra.mrb[0].mxu0 %v1015
      %v1173 = vpop.f32.mrb[0].mxu0
      %v1174 = vadd.f32 %v1065, %v1173
      %v1175 = vpop.f32.mrb[0].mxu0
      %v1176 = vpop.f32.mrb[0].mxu0
      %v1177 = vadd.f32 %v1065, %v1176
      %v1178 = vpop.f32.mrb[0].mxu0
      %1179 = vmatprep.mubr.bf16.mxu0 0
      %1180 = vmatmul.mubr.bf16.gmra.mrb[0].mxu0 %v1016
      %v1181 = vpop.f32.mrb[0].mxu0
      %v1182 = vadd.f32 %v1065, %v1181
      %v1183 = vpop.f32.mrb[0].mxu0
      %v1184 = vpop.f32.mrb[0].mxu0
      %v1185 = vadd.f32 %v1065, %v1184
      %v1186 = vpop.f32.mrb[0].mxu0
      %1187 = vmatprep.mubr.bf16.mxu0 0
      %1188 = vmatmul.mubr.bf16.gmra.mrb[0].mxu0 %v1017
      %v1189 = vpop.f32.mrb[0].mxu0
      %v1190 = vadd.f32 %v1065, %v1189
      %v1191 = vpop.f32.mrb[0].mxu0
      %v1192 = vpop.f32.mrb[0].mxu0
      %v1193 = vadd.f32 %v1065, %v1192
      %v1194 = vpop.f32.mrb[0].mxu0
      %1195 = vmatprep.mubr.bf16.mxu0 0
      %1196 = vmatmul.mubr.bf16.gmra.mrb[0].mxu0 %v1018
      %v1197 = vpop.f32.mrb[0].mxu0
      %v1198 = vadd.f32 %v1065, %v1197
      %v1199 = vpop.f32.mrb[0].mxu0
      %v1200 = vpop.f32.mrb[0].mxu0
      %v1201 = vadd.f32 %v1065, %v1200
      %v1202 = vpop.f32.mrb[0].mxu0
      %1203 = vmatprep.mubr.bf16.mxu0 0
      %1204 = vmatmul.mubr.bf16.gmra.mrb[0].mxu0 %v1019
      %v1205 = vpop.f32.mrb[0].mxu0
      %v1206 = vadd.f32 %v1065, %v1205
      %v1207 = vpop.f32.mrb[0].mxu0
      %v1208 = vpop.f32.mrb[0].mxu0
      %v1209 = vadd.f32 %v1065, %v1208
      %v1210 = vpop.f32.mrb[0].mxu0
      %1211 = vmatprep.mubr.bf16.mxu0 0
      %1212 = vmatmul.mubr.bf16.gmra.mrb[0].mxu0 %v1020
      %v1213 = vpop.f32.mrb[0].mxu0
      %v1214 = vadd.f32 %v1065, %v1213
      %v1215 = vpop.f32.mrb[0].mxu0
      %v1216 = vpop.f32.mrb[0].mxu0
      %v1217 = vadd.f32 %v1065, %v1216
      %v1218 = vpop.f32.mrb[0].mxu0
      %1219 = vmatprep.mubr.bf16.mxu0 0
      %1220 = vmatmul.mubr.bf16.gmra.mrb[0].mxu0 %v1021
      %v1221 = vpop.f32.mrb[0].mxu0
      %v1222 = vadd.f32 %v1065, %v1221
      %v1223 = vpop.f32.mrb[0].mxu0
      %v1224 = vpop.f32.mrb[0].mxu0
      %v1225 = vadd.f32 %v1065, %v1224
      %v1226 = vpop.f32.mrb[0].mxu0
      %1227 = vmatprep.mubr.bf16.mxu0 0
      %1228 = vmatmul.mubr.bf16.gmra.mrb[0].mxu0 %v1022
      %v1229 = vpop.f32.mrb[0].mxu0
      %v1230 = vadd.f32 %v1065, %v1229
      %v1231 = vpop.f32.mrb[0].mxu0
      %v1232 = vpop.f32.mrb[0].mxu0
      %v1233 = vadd.f32 %v1065, %v1232
      %v1234 = vpop.f32.mrb[0].mxu0
      %1235 = vmatprep.mubr.bf16.mxu0 0
      %1236 = vmatmul.mubr.bf16.gmra.mrb[0].mxu0 %v1023
      %v1237 = vpop.f32.mrb[0].mxu0
      %v1238 = vadd.f32 %v1065, %v1237
      %v1239 = vpop.f32.mrb[0].mxu0
      %v1240 = vpop.f32.mrb[0].mxu0
      %v1241 = vadd.f32 %v1065, %v1240
      %v1242 = vpop.f32.mrb[0].mxu0
      %1243 = vmatprep.mubr.bf16.mxu0 0
      %1244 = vmatmul.mubr.bf16.gmra.mrb[0].mxu0 %v1024
      %v1245 = vpop.f32.mrb[0].mxu0
      %v1246 = vadd.f32 %v1065, %v1245
      %v1247 = vpop.f32.mrb[0].mxu0
      %v1248 = vpop.f32.mrb[0].mxu0
      %v1249 = vadd.f32 %v1065, %v1248
      %v1250 = vpop.f32.mrb[0].mxu0
      %1251 = vmatprep.mubr.bf16.mxu0 0
      %1252 = vmatmul.mubr.bf16.gmra.mrb[0].mxu0 %v1025
      %v1253 = vpop.f32.mrb[0].mxu0
      %v1254 = vadd.f32 %v1065, %v1253
      %v1255 = vpop.f32.mrb[0].mxu0
      %v1256 = vpop.f32.mrb[0].mxu0
      %v1257 = vadd.f32 %v1065, %v1256
      %v1258 = vpop.f32.mrb[0].mxu0
      %1259 = vmatprep.mubr.bf16.mxu0 0
      %1260 = vmatmul.mubr.bf16.gmra.mrb[0].mxu0 %v1026
      %v1261 = vpop.f32.mrb[0].mxu0
      %v1262 = vadd.f32 %v1065, %v1261
      %v1263 = vpop.f32.mrb[0].mxu0
      %v1264 = vpop.f32.mrb[0].mxu0
      %v1265 = vadd.f32 %v1065, %v1264
      %v1266 = vpop.f32.mrb[0].mxu0
      %1267 = vmatprep.mubr.bf16.mxu0 0
      %1268 = vmatmul.mubr.bf16.gmra.mrb[0].mxu0 %v1027
      %v1269 = vpop.f32.mrb[0].mxu0
      %v1270 = vadd.f32 %v1065, %v1269
      %v1271 = vpop.f32.mrb[0].mxu0
      %v1272 = vpop.f32.mrb[0].mxu0
      %v1273 = vadd.f32 %v1065, %v1272
      %v1274 = vpop.f32.mrb[0].mxu0
      %1275 = vmatprep.mubr.bf16.mxu0 0
      %1276 = vmatmul.mubr.bf16.gmra.mrb[0].mxu0 %v1028
      %v1277 = vpop.f32.mrb[0].mxu0
      %v1278 = vadd.f32 %v1065, %v1277
      %v1279 = vpop.f32.mrb[0].mxu0
      %v1280 = vpop.f32.mrb[0].mxu0
      %v1281 = vadd.f32 %v1065, %v1280
      %v1282 = vpop.f32.mrb[0].mxu0
      %1283 = vmatprep.mubr.bf16.mxu0 0
      %1284 = vmatmul.mubr.bf16.gmra.mrb[0].mxu0 %v1029
      %v1285 = vpop.f32.mrb[0].mxu0
      %v1286 = vadd.f32 %v1065, %v1285
      %v1287 = vpop.f32.mrb[0].mxu0
      %v1288 = vpop.f32.mrb[0].mxu0
      %v1289 = vadd.f32 %v1065, %v1288
      %v1290 = vpop.f32.mrb[0].mxu0
      %1291 = vmatprep.mubr.bf16.mxu0 0
      %1292 = vmatmul.mubr.bf16.gmra.mrb[0].mxu0 %v1030
      %v1293 = vpop.f32.mrb[0].mxu0
      %v1294 = vadd.f32 %v1065, %v1293
      %v1295 = vpop.f32.mrb[0].mxu0
      %v1296 = vpop.f32.mrb[0].mxu0
      %v1297 = vadd.f32 %v1065, %v1296
      %v1298 = vpop.f32.mrb[0].mxu0
      %1299 = vmatprep.mubr.bf16.mxu0 0
      %1300 = vmatmul.mubr.bf16.gmra.mrb[0].mxu0 %v1031
      %v1301 = vpop.f32.mrb[0].mxu0
      %v1302 = vadd.f32 %v1065, %v1301
      %v1303 = vpop.f32.mrb[0].mxu0
      %v1304 = vpop.f32.mrb[0].mxu0
      %v1305 = vadd.f32 %v1065, %v1304
      %v1306 = vpop.f32.mrb[0].mxu0
      %1307 = vmatprep.mubr.bf16.mxu0 0
      %1308 = vmatmul.mubr.bf16.gmra.mrb[0].mxu0 %v1032
      %v1309 = vpop.f32.mrb[0].mxu0
      %v1310 = vadd.f32 %v1065, %v1309
      %v1311 = vpop.f32.mrb[0].mxu0
      %v1312 = vpop.f32.mrb[0].mxu0
      %v1313 = vadd.f32 %v1065, %v1312
      %v1314 = vpop.f32.mrb[0].mxu0
      %1315 = vmatprep.mubr.bf16.mxu0 0
      %1316 = vmatmul.mubr.bf16.gmra.mrb[0].mxu0 %v1033
      %v1317 = vpop.f32.mrb[0].mxu0
      %v1318 = vadd.f32 %v1065, %v1317
      %v1319 = vpop.f32.mrb[0].mxu0
      %v1320 = vpop.f32.mrb[0].mxu0
      %v1321 = vadd.f32 %v1065, %v1320
      %v1322 = vpop.f32.mrb[0].mxu0
      %1323 = vmatprep.mubr.bf16.mxu0 0
      %1324 = vmatmul.mubr.bf16.gmra.mrb[0].mxu0 %v1034
      %v1325 = vpop.f32.mrb[0].mxu0
      %v1326 = vadd.f32 %v1065, %v1325
      %v1327 = vpop.f32.mrb[0].mxu0
      %v1328 = vpop.f32.mrb[0].mxu0
      %v1329 = vadd.f32 %v1065, %v1328
      %v1330 = vpop.f32.mrb[0].mxu0
      %1331 = vmatprep.mubr.bf16.mxu0 0
      %1332 = vmatmul.mubr.bf16.gmra.mrb[0].mxu0 %v1035
      %v1333 = vpop.f32.mrb[0].mxu0
      %v1334 = vadd.f32 %v1065, %v1333
      %v1335 = vpop.f32.mrb[0].mxu0
      %v1336 = vpop.f32.mrb[0].mxu0
      %v1337 = vadd.f32 %v1065, %v1336
      %v1338 = vpop.f32.mrb[0].mxu0
      %1339 = vmatprep.mubr.bf16.mxu0 0
      %1340 = vmatmul.mubr.bf16.gmra.mrb[0].mxu0 %v1036
      %v1341 = vpop.f32.mrb[0].mxu0
      %v1342 = vadd.f32 %v1065, %v1341
      %v1343 = vpop.f32.mrb[0].mxu0
      %v1344 = vpop.f32.mrb[0].mxu0
      %v1345 = vadd.f32 %v1065, %v1344
      %v1346 = vpop.f32.mrb[0].mxu0
      %1347 = vmatprep.mubr.bf16.mxu0 0
      %1348 = vmatmul.mubr.bf16.gmra.mrb[0].mxu0 %v1037
      %v1349 = vpop.f32.mrb[0].mxu0
      %v1350 = vadd.f32 %v1065, %v1349
      %v1351 = vpop.f32.mrb[0].mxu0
      %v1352 = vpop.f32.mrb[0].mxu0
      %v1353 = vadd.f32 %v1065, %v1352
      %v1354 = vpop.f32.mrb[0].mxu0
      %1355 = vmatprep.mubr.bf16.mxu0 0
      %1356 = vmatmul.mubr.bf16.gmra.mrb[0].mxu0 %v1038
      %v1357 = vpop.f32.mrb[0].mxu0
      %v1358 = vadd.f32 %v1065, %v1357
      %v1359 = vpop.f32.mrb[0].mxu0
      %v1360 = vpop.f32.mrb[0].mxu0
      %v1361 = vadd.f32 %v1065, %v1360
      %v1362 = vpop.f32.mrb[0].mxu0
      %1363 = vmatprep.mubr.bf16.mxu0 0
      %1364 = vmatmul.mubr.bf16.gmra.mrb[0].mxu0 %v1039
      %v1365 = vpop.f32.mrb[0].mxu0
      %v1366 = vadd.f32 %v1065, %v1365
      %v1367 = vpop.f32.mrb[0].mxu0
      %v1368 = vpop.f32.mrb[0].mxu0
      %v1369 = vadd.f32 %v1065, %v1368
      %v1370 = vpop.f32.mrb[0].mxu0
      %1371 = vmatprep.mubr.bf16.mxu0 0
      %1372 = vmatmul.mubr.bf16.gmra.mrb[0].mxu0 %v1040
      %v1373 = vpop.f32.mrb[0].mxu0
      %v1374 = vadd.f32 %v1065, %v1373
      %v1375 = vpop.f32.mrb[0].mxu0
      %v1376 = vpop.f32.mrb[0].mxu0
      %v1377 = vadd.f32 %v1065, %v1376
      %v1378 = vpop.f32.mrb[0].mxu0
      %1379 = vmatprep.mubr.bf16.mxu0 0
      %1380 = vmatmul.mubr.bf16.gmra.mrb[0].mxu0 %v1041
      %v1381 = vpop.f32.mrb[0].mxu0
      %v1382 = vadd.f32 %v1065, %v1381
      %v1383 = vpop.f32.mrb[0].mxu0
      %v1384 = vpop.f32.mrb[0].mxu0
      %v1385 = vadd.f32 %v1065, %v1384
      %v1386 = vpop.f32.mrb[0].mxu0
      %1387 = vmatprep.mubr.bf16.mxu0 0
      %1388 = vmatmul.mubr.bf16.gmra.mrb[0].mxu0 %v1042
      %v1389 = vpop.f32.mrb[0].mxu0
      %v1390 = vadd.f32 %v1065, %v1389
      %v1391 = vpop.f32.mrb[0].mxu0
      %v1392 = vpop.f32.mrb[0].mxu0
      %v1393 = vadd.f32 %v1065, %v1392
      %v1394 = vpop.f32.mrb[0].mxu0
      %1395 = vmatprep.mubr.bf16.mxu0 0
      %1396 = vmatmul.mubr.bf16.gmra.mrb[0].mxu0 %v1043
      %v1397 = vpop.f32.mrb[0].mxu0
      %v1398 = vadd.f32 %v1065, %v1397
      %v1399 = vpop.f32.mrb[0].mxu0
      %v1400 = vpop.f32.mrb[0].mxu0
      %v1401 = vadd.f32 %v1065, %v1400
      %v1402 = vpop.f32.mrb[0].mxu0
      %1403 = vdwg.mxu0
      %v1404 = vmul.f32 %v1150, %v1150
      %v1405 = vmul.f32 %v1153, %v1153
      %v1406 = vmul.f32 %v1158, %v1158
      %v1407 = vmul.f32 %v1161, %v1161
      %v1408 = vmul.f32 %v1166, %v1166
      %v1409 = vmul.f32 %v1169, %v1169
      %v1410 = vmul.f32 %v1174, %v1174
      %v1411 = vmul.f32 %v1177, %v1177
      %v1412 = vmul.f32 %v1182, %v1182
      %v1413 = vmul.f32 %v1185, %v1185
      %v1414 = vmul.f32 %v1190, %v1190
      %v1415 = vmul.f32 %v1193, %v1193
      %v1416 = vmul.f32 %v1198, %v1198
      %v1417 = vmul.f32 %v1201, %v1201
      %v1418 = vmul.f32 %v1206, %v1206
      %v1419 = vmul.f32 %v1209, %v1209
      %v1420 = vmul.f32 %v1214, %v1214
      %v1421 = vmul.f32 %v1217, %v1217
      %v1422 = vmul.f32 %v1222, %v1222
      %v1423 = vmul.f32 %v1225, %v1225
      %v1424 = vmul.f32 %v1230, %v1230
      %v1425 = vmul.f32 %v1233, %v1233
      %v1426 = vmul.f32 %v1238, %v1238
      %v1427 = vmul.f32 %v1241, %v1241
      %v1428 = vmul.f32 %v1246, %v1246
      %v1429 = vmul.f32 %v1249, %v1249
      %v1430 = vmul.f32 %v1254, %v1254
      %v1431 = vmul.f32 %v1257, %v1257
      %v1432 = vmul.f32 %v1262, %v1262
      %v1433 = vmul.f32 %v1265, %v1265
      %v1434 = vmul.f32 %v1270, %v1270
      %v1435 = vmul.f32 %v1273, %v1273
      %v1436 = vmul.f32 %v1278, %v1278
      %v1437 = vmul.f32 %v1281, %v1281
      %v1438 = vmul.f32 %v1286, %v1286
      %v1439 = vmul.f32 %v1289, %v1289
      %v1440 = vmul.f32 %v1294, %v1294
      %v1441 = vmul.f32 %v1297, %v1297
      %v1442 = vmul.f32 %v1302, %v1302
      %v1443 = vmul.f32 %v1305, %v1305
      %v1444 = vmul.f32 %v1310, %v1310
      %v1445 = vmul.f32 %v1313, %v1313
      %v1446 = vmul.f32 %v1318, %v1318
      %v1447 = vmul.f32 %v1321, %v1321
      %v1448 = vmul.f32 %v1326, %v1326
      %v1449 = vmul.f32 %v1329, %v1329
      %v1450 = vmul.f32 %v1334, %v1334
      %v1451 = vmul.f32 %v1337, %v1337
      %v1452 = vmul.f32 %v1342, %v1342
      %v1453 = vmul.f32 %v1345, %v1345
      %v1454 = vmul.f32 %v1350, %v1350
      %v1455 = vmul.f32 %v1353, %v1353
      %v1456 = vmul.f32 %v1358, %v1358
      %v1457 = vmul.f32 %v1361, %v1361
      %v1458 = vmul.f32 %v1366, %v1366
      %v1459 = vmul.f32 %v1369, %v1369
      %v1460 = vmul.f32 %v1374, %v1374
      %v1461 = vmul.f32 %v1377, %v1377
      %v1462 = vmul.f32 %v1382, %v1382
      %v1463 = vmul.f32 %v1385, %v1385
      %v1464 = vmul.f32 %v1390, %v1390
      %v1465 = vmul.f32 %v1393, %v1393
      %v1466 = vmul.f32 %v1398, %v1398
      %v1467 = vmul.f32 %v1401, %v1401
      %1468 = vadd.xlane.f32.xlu0 %v1404
      %v1469 = vpop.xlane.xlu0 %1468
      %1470 = vadd.xlane.f32.xlu0 %v1405
      %v1471 = vpop.xlane.xlu0 %1470
      %1472 = vadd.xlane.f32.xlu0 %v1406
      %v1473 = vpop.xlane.xlu0 %1472
      %1474 = vadd.xlane.f32.xlu0 %v1407
      %v1475 = vpop.xlane.xlu0 %1474
      %1476 = vadd.xlane.f32.xlu0 %v1408
      %v1477 = vpop.xlane.xlu0 %1476
      %1478 = vadd.xlane.f32.xlu0 %v1409
      %v1479 = vpop.xlane.xlu0 %1478
      %1480 = vadd.xlane.f32.xlu0 %v1410
      %v1481 = vpop.xlane.xlu0 %1480
      %1482 = vadd.xlane.f32.xlu0 %v1411
      %v1483 = vpop.xlane.xlu0 %1482
      %1484 = vadd.xlane.f32.xlu0 %v1412
      %v1485 = vpop.xlane.xlu0 %1484
      %1486 = vadd.xlane.f32.xlu0 %v1413
      %v1487 = vpop.xlane.xlu0 %1486
      %1488 = vadd.xlane.f32.xlu0 %v1414
      %v1489 = vpop.xlane.xlu0 %1488
      %1490 = vadd.xlane.f32.xlu0 %v1415
      %v1491 = vpop.xlane.xlu0 %1490
      %1492 = vadd.xlane.f32.xlu0 %v1416
      %v1493 = vpop.xlane.xlu0 %1492
      %1494 = vadd.xlane.f32.xlu0 %v1417
      %v1495 = vpop.xlane.xlu0 %1494
      %1496 = vadd.xlane.f32.xlu0 %v1418
      %v1497 = vpop.xlane.xlu0 %1496
      %1498 = vadd.xlane.f32.xlu0 %v1419
      %v1499 = vpop.xlane.xlu0 %1498
      %1500 = vadd.xlane.f32.xlu0 %v1420
      %v1501 = vpop.xlane.xlu0 %1500
      %1502 = vadd.xlane.f32.xlu0 %v1421
      %v1503 = vpop.xlane.xlu0 %1502
      %1504 = vadd.xlane.f32.xlu0 %v1422
      %v1505 = vpop.xlane.xlu0 %1504
      %1506 = vadd.xlane.f32.xlu0 %v1423
      %v1507 = vpop.xlane.xlu0 %1506
      %1508 = vadd.xlane.f32.xlu0 %v1424
      %v1509 = vpop.xlane.xlu0 %1508
      %1510 = vadd.xlane.f32.xlu0 %v1425
      %v1511 = vpop.xlane.xlu0 %1510
      %1512 = vadd.xlane.f32.xlu0 %v1426
      %v1513 = vpop.xlane.xlu0 %1512
      %1514 = vadd.xlane.f32.xlu0 %v1427
      %v1515 = vpop.xlane.xlu0 %1514
      %1516 = vadd.xlane.f32.xlu0 %v1428
      %v1517 = vpop.xlane.xlu0 %1516
      %1518 = vadd.xlane.f32.xlu0 %v1429
      %v1519 = vpop.xlane.xlu0 %1518
      %1520 = vadd.xlane.f32.xlu0 %v1430
      %v1521 = vpop.xlane.xlu0 %1520
      %1522 = vadd.xlane.f32.xlu0 %v1431
      %v1523 = vpop.xlane.xlu0 %1522
      %1524 = vadd.xlane.f32.xlu0 %v1432
      %v1525 = vpop.xlane.xlu0 %1524
      %1526 = vadd.xlane.f32.xlu0 %v1433
      %v1527 = vpop.xlane.xlu0 %1526
      %1528 = vadd.xlane.f32.xlu0 %v1434
      %v1529 = vpop.xlane.xlu0 %1528
      %1530 = vadd.xlane.f32.xlu0 %v1435
      %v1531 = vpop.xlane.xlu0 %1530
      %1532 = vadd.xlane.f32.xlu0 %v1436
      %v1533 = vpop.xlane.xlu0 %1532
      %1534 = vadd.xlane.f32.xlu0 %v1437
      %v1535 = vpop.xlane.xlu0 %1534
      %1536 = vadd.xlane.f32.xlu0 %v1438
      %v1537 = vpop.xlane.xlu0 %1536
      %1538 = vadd.xlane.f32.xlu0 %v1439
      %v1539 = vpop.xlane.xlu0 %1538
      %1540 = vadd.xlane.f32.xlu0 %v1440
      %v1541 = vpop.xlane.xlu0 %1540
      %1542 = vadd.xlane.f32.xlu0 %v1441
      %v1543 = vpop.xlane.xlu0 %1542
      %1544 = vadd.xlane.f32.xlu0 %v1442
      %v1545 = vpop.xlane.xlu0 %1544
      %1546 = vadd.xlane.f32.xlu0 %v1443
      %v1547 = vpop.xlane.xlu0 %1546
      %1548 = vadd.xlane.f32.xlu0 %v1444
      %v1549 = vpop.xlane.xlu0 %1548
      %1550 = vadd.xlane.f32.xlu0 %v1445
      %v1551 = vpop.xlane.xlu0 %1550
      %1552 = vadd.xlane.f32.xlu0 %v1446
      %v1553 = vpop.xlane.xlu0 %1552
      %1554 = vadd.xlane.f32.xlu0 %v1447
      %v1555 = vpop.xlane.xlu0 %1554
      %1556 = vadd.xlane.f32.xlu0 %v1448
      %v1557 = vpop.xlane.xlu0 %1556
      %1558 = vadd.xlane.f32.xlu0 %v1449
      %v1559 = vpop.xlane.xlu0 %1558
      %1560 = vadd.xlane.f32.xlu0 %v1450
      %v1561 = vpop.xlane.xlu0 %1560
      %1562 = vadd.xlane.f32.xlu0 %v1451
      %v1563 = vpop.xlane.xlu0 %1562
      %1564 = vadd.xlane.f32.xlu0 %v1452
      %v1565 = vpop.xlane.xlu0 %1564
      %1566 = vadd.xlane.f32.xlu0 %v1453
      %v1567 = vpop.xlane.xlu0 %1566
      %1568 = vadd.xlane.f32.xlu0 %v1454
      %v1569 = vpop.xlane.xlu0 %1568
      %1570 = vadd.xlane.f32.xlu0 %v1455
      %v1571 = vpop.xlane.xlu0 %1570
      %1572 = vadd.xlane.f32.xlu0 %v1456
      %v1573 = vpop.xlane.xlu0 %1572
      %1574 = vadd.xlane.f32.xlu0 %v1457
      %v1575 = vpop.xlane.xlu0 %1574
      %1576 = vadd.xlane.f32.xlu0 %v1458
      %v1577 = vpop.xlane.xlu0 %1576
      %1578 = vadd.xlane.f32.xlu0 %v1459
      %v1579 = vpop.xlane.xlu0 %1578
      %1580 = vadd.xlane.f32.xlu0 %v1460
      %v1581 = vpop.xlane.xlu0 %1580
      %1582 = vadd.xlane.f32.xlu0 %v1461
      %v1583 = vpop.xlane.xlu0 %1582
      %1584 = vadd.xlane.f32.xlu0 %v1462
      %v1585 = vpop.xlane.xlu0 %1584
      %1586 = vadd.xlane.f32.xlu0 %v1463
      %v1587 = vpop.xlane.xlu0 %1586
      %1588 = vadd.xlane.f32.xlu0 %v1464
      %v1589 = vpop.xlane.xlu0 %1588
      %1590 = vadd.xlane.f32.xlu0 %v1465
      %v1591 = vpop.xlane.xlu0 %1590
      %1592 = vadd.xlane.f32.xlu0 %v1466
      %v1593 = vpop.xlane.xlu0 %1592
      %1594 = vadd.xlane.f32.xlu0 %v1467
      %v1595 = vpop.xlane.xlu0 %1594
      %v1596 = vadd.f32 %v1469, 1e-14
      %v1597 = vadd.f32 %v1471, 1e-14
      %v1598 = vadd.f32 %v1473, 1e-14
      %v1599 = vadd.f32 %v1475, 1e-14
      %v1600 = vadd.f32 %v1477, 1e-14
      %v1601 = vadd.f32 %v1479, 1e-14
      %v1602 = vadd.f32 %v1481, 1e-14
      %v1603 = vadd.f32 %v1483, 1e-14
      %v1604 = vadd.f32 %v1485, 1e-14
      %v1605 = vadd.f32 %v1487, 1e-14
      %v1606 = vadd.f32 %v1489, 1e-14
      %v1607 = vadd.f32 %v1491, 1e-14
      %v1608 = vadd.f32 %v1493, 1e-14
      %v1609 = vadd.f32 %v1495, 1e-14
      %v1610 = vadd.f32 %v1497, 1e-14
      %v1611 = vadd.f32 %v1499, 1e-14
      %v1612 = vadd.f32 %v1501, 1e-14
      %v1613 = vadd.f32 %v1503, 1e-14
      %v1614 = vadd.f32 %v1505, 1e-14
      %v1615 = vadd.f32 %v1507, 1e-14
      %v1616 = vadd.f32 %v1509, 1e-14
      %v1617 = vadd.f32 %v1511, 1e-14
      %v1618 = vadd.f32 %v1513, 1e-14
      %v1619 = vadd.f32 %v1515, 1e-14
      %v1620 = vadd.f32 %v1517, 1e-14
      %v1621 = vadd.f32 %v1519, 1e-14
      %v1622 = vadd.f32 %v1521, 1e-14
      %v1623 = vadd.f32 %v1523, 1e-14
      %v1624 = vadd.f32 %v1525, 1e-14
      %v1625 = vadd.f32 %v1527, 1e-14
      %v1626 = vadd.f32 %v1529, 1e-14
      %v1627 = vadd.f32 %v1531, 1e-14
      %v1628 = vadd.f32 %v1533, 1e-14
      %v1629 = vadd.f32 %v1535, 1e-14
      %v1630 = vadd.f32 %v1537, 1e-14
      %v1631 = vadd.f32 %v1539, 1e-14
      %v1632 = vadd.f32 %v1541, 1e-14
      %v1633 = vadd.f32 %v1543, 1e-14
      %v1634 = vadd.f32 %v1545, 1e-14
      %v1635 = vadd.f32 %v1547, 1e-14
      %v1636 = vadd.f32 %v1549, 1e-14
      %v1637 = vadd.f32 %v1551, 1e-14
      %v1638 = vadd.f32 %v1553, 1e-14
      %v1639 = vadd.f32 %v1555, 1e-14
      %v1640 = vadd.f32 %v1557, 1e-14
      %v1641 = vadd.f32 %v1559, 1e-14
      %v1642 = vadd.f32 %v1561, 1e-14
      %v1643 = vadd.f32 %v1563, 1e-14
      %v1644 = vadd.f32 %v1565, 1e-14
      %v1645 = vadd.f32 %v1567, 1e-14
      %v1646 = vadd.f32 %v1569, 1e-14
      %v1647 = vadd.f32 %v1571, 1e-14
      %v1648 = vadd.f32 %v1573, 1e-14
      %v1649 = vadd.f32 %v1575, 1e-14
      %v1650 = vadd.f32 %v1577, 1e-14
      %v1651 = vadd.f32 %v1579, 1e-14
      %v1652 = vadd.f32 %v1581, 1e-14
      %v1653 = vadd.f32 %v1583, 1e-14
      %v1654 = vadd.f32 %v1585, 1e-14
      %v1655 = vadd.f32 %v1587, 1e-14
      %v1656 = vadd.f32 %v1589, 1e-14
      %v1657 = vadd.f32 %v1591, 1e-14
      %v1658 = vadd.f32 %v1593, 1e-14
      %v1659 = vadd.f32 %v1595, 1e-14
      %v1660 = vrsqrt.pop %v1596
      %v1661 = vrsqrt.pop %v1597
      %v1662 = vrsqrt.pop %v1598
      %v1663 = vrsqrt.pop %v1599
      %v1664 = vrsqrt.pop %v1600
      %v1665 = vrsqrt.pop %v1601
      %v1666 = vrsqrt.pop %v1602
      %v1667 = vrsqrt.pop %v1603
      %v1668 = vrsqrt.pop %v1604
      %v1669 = vrsqrt.pop %v1605
      %v1670 = vrsqrt.pop %v1606
      %v1671 = vrsqrt.pop %v1607
      %v1672 = vrsqrt.pop %v1608
      %v1673 = vrsqrt.pop %v1609
      %v1674 = vrsqrt.pop %v1610
      %v1675 = vrsqrt.pop %v1611
      %v1676 = vrsqrt.pop %v1612
      %v1677 = vrsqrt.pop %v1613
      %v1678 = vrsqrt.pop %v1614
      %v1679 = vrsqrt.pop %v1615
      %v1680 = vrsqrt.pop %v1616
      %v1681 = vrsqrt.pop %v1617
      %v1682 = vrsqrt.pop %v1618
      %v1683 = vrsqrt.pop %v1619
      %v1684 = vrsqrt.pop %v1620
      %v1685 = vrsqrt.pop %v1621
      %v1686 = vrsqrt.pop %v1622
      %v1687 = vrsqrt.pop %v1623
      %v1688 = vrsqrt.pop %v1624
      %v1689 = vrsqrt.pop %v1625
      %v1690 = vrsqrt.pop %v1626
      %v1691 = vrsqrt.pop %v1627
      %v1692 = vrsqrt.pop %v1628
      %v1693 = vrsqrt.pop %v1629
      %v1694 = vrsqrt.pop %v1630
      %v1695 = vrsqrt.pop %v1631
      %v1696 = vrsqrt.pop %v1632
      %v1697 = vrsqrt.pop %v1633
      %v1698 = vrsqrt.pop %v1634
      %v1699 = vrsqrt.pop %v1635
      %v1700 = vrsqrt.pop %v1636
      %v1701 = vrsqrt.pop %v1637
      %v1702 = vrsqrt.pop %v1638
      %v1703 = vrsqrt.pop %v1639
      %v1704 = vrsqrt.pop %v1640
      %v1705 = vrsqrt.pop %v1641
      %v1706 = vrsqrt.pop %v1642
      %v1707 = vrsqrt.pop %v1643
      %v1708 = vrsqrt.pop %v1644
      %v1709 = vrsqrt.pop %v1645
      %v1710 = vrsqrt.pop %v1646
      %v1711 = vrsqrt.pop %v1647
      %v1712 = vrsqrt.pop %v1648
      %v1713 = vrsqrt.pop %v1649
      %v1714 = vrsqrt.pop %v1650
      %v1715 = vrsqrt.pop %v1651
      %v1716 = vrsqrt.pop %v1652
      %v1717 = vrsqrt.pop %v1653
      %v1718 = vrsqrt.pop %v1654
      %v1719 = vrsqrt.pop %v1655
      %v1720 = vrsqrt.pop %v1656
      %v1721 = vrsqrt.pop %v1657
      %v1722 = vrsqrt.pop %v1658
      %v1723 = vrsqrt.pop %v1659
      %v1724 = vmul.f32 %v1150, %v1660
      %v1725 = vmul.f32 %v1153, %v1661
      %v1726 = vmul.f32 %v1158, %v1662
      %v1727 = vmul.f32 %v1161, %v1663
      %v1728 = vmul.f32 %v1166, %v1664
      %v1729 = vmul.f32 %v1169, %v1665
      %v1730 = vmul.f32 %v1174, %v1666
      %v1731 = vmul.f32 %v1177, %v1667
      %v1732 = vmul.f32 %v1182, %v1668
      %v1733 = vmul.f32 %v1185, %v1669
      %v1734 = vmul.f32 %v1190, %v1670
      %v1735 = vmul.f32 %v1193, %v1671
      %v1736 = vmul.f32 %v1198, %v1672
      %v1737 = vmul.f32 %v1201, %v1673
      %v1738 = vmul.f32 %v1206, %v1674
      %v1739 = vmul.f32 %v1209, %v1675
      %v1740 = vmul.f32 %v1214, %v1676
      %v1741 = vmul.f32 %v1217, %v1677
      %v1742 = vmul.f32 %v1222, %v1678
      %v1743 = vmul.f32 %v1225, %v1679
      %v1744 = vmul.f32 %v1230, %v1680
      %v1745 = vmul.f32 %v1233, %v1681
      %v1746 = vmul.f32 %v1238, %v1682
      %v1747 = vmul.f32 %v1241, %v1683
      %v1748 = vmul.f32 %v1246, %v1684
      %v1749 = vmul.f32 %v1249, %v1685
      %v1750 = vmul.f32 %v1254, %v1686
      %v1751 = vmul.f32 %v1257, %v1687
      %v1752 = vmul.f32 %v1262, %v1688
      %v1753 = vmul.f32 %v1265, %v1689
      %v1754 = vmul.f32 %v1270, %v1690
      %v1755 = vmul.f32 %v1273, %v1691
      %v1756 = vmul.f32 %v1278, %v1692
      %v1757 = vmul.f32 %v1281, %v1693
      %v1758 = vmul.f32 %v1286, %v1694
      %v1759 = vmul.f32 %v1289, %v1695
      %v1760 = vmul.f32 %v1294, %v1696
      %v1761 = vmul.f32 %v1297, %v1697
      %v1762 = vmul.f32 %v1302, %v1698
      %v1763 = vmul.f32 %v1305, %v1699
      %v1764 = vmul.f32 %v1310, %v1700
      %v1765 = vmul.f32 %v1313, %v1701
      %v1766 = vmul.f32 %v1318, %v1702
      %v1767 = vmul.f32 %v1321, %v1703
      %v1768 = vmul.f32 %v1326, %v1704
      %v1769 = vmul.f32 %v1329, %v1705
      %v1770 = vmul.f32 %v1334, %v1706
      %v1771 = vmul.f32 %v1337, %v1707
      %v1772 = vmul.f32 %v1342, %v1708
      %v1773 = vmul.f32 %v1345, %v1709
      %v1774 = vmul.f32 %v1350, %v1710
      %v1775 = vmul.f32 %v1353, %v1711
      %v1776 = vmul.f32 %v1358, %v1712
      %v1777 = vmul.f32 %v1361, %v1713
      %v1778 = vmul.f32 %v1366, %v1714
      %v1779 = vmul.f32 %v1369, %v1715
      %v1780 = vmul.f32 %v1374, %v1716
      %v1781 = vmul.f32 %v1377, %v1717
      %v1782 = vmul.f32 %v1382, %v1718
      %v1783 = vmul.f32 %v1385, %v1719
      %v1784 = vmul.f32 %v1390, %v1720
      %v1785 = vmul.f32 %v1393, %v1721
      %v1786 = vmul.f32 %v1398, %v1722
      %v1787 = vmul.f32 %v1401, %v1723
      %v1788 = vpack.c.bf16 %v1725, %v1724
      %v1789 = vpack.c.bf16 %v1727, %v1726
      %v1790 = vpack.c.bf16 %v1729, %v1728
      %v1791 = vpack.c.bf16 %v1731, %v1730
      %v1792 = vpack.c.bf16 %v1733, %v1732
      %v1793 = vpack.c.bf16 %v1735, %v1734
      %v1794 = vpack.c.bf16 %v1737, %v1736
      %v1795 = vpack.c.bf16 %v1739, %v1738
      %v1796 = vpack.c.bf16 %v1741, %v1740
      %v1797 = vpack.c.bf16 %v1743, %v1742
      %v1798 = vpack.c.bf16 %v1745, %v1744
      %v1799 = vpack.c.bf16 %v1747, %v1746
      %v1800 = vpack.c.bf16 %v1749, %v1748
      %v1801 = vpack.c.bf16 %v1751, %v1750
      %v1802 = vpack.c.bf16 %v1753, %v1752
      %v1803 = vpack.c.bf16 %v1755, %v1754
      %v1804 = vpack.c.bf16 %v1757, %v1756
      %v1805 = vpack.c.bf16 %v1759, %v1758
      %v1806 = vpack.c.bf16 %v1761, %v1760
      %v1807 = vpack.c.bf16 %v1763, %v1762
      %v1808 = vpack.c.bf16 %v1765, %v1764
      %v1809 = vpack.c.bf16 %v1767, %v1766
      %v1810 = vpack.c.bf16 %v1769, %v1768
      %v1811 = vpack.c.bf16 %v1771, %v1770
      %v1812 = vpack.c.bf16 %v1773, %v1772
      %v1813 = vpack.c.bf16 %v1775, %v1774
      %v1814 = vpack.c.bf16 %v1777, %v1776
      %v1815 = vpack.c.bf16 %v1779, %v1778
      %v1816 = vpack.c.bf16 %v1781, %v1780
      %v1817 = vpack.c.bf16 %v1783, %v1782
      %v1818 = vpack.c.bf16 %v1785, %v1784
      %v1819 = vpack.c.bf16 %v1787, %v1786
      %v1852 = vunpack.c.l.b16 %v1788
      %v1853 = vunpack.c.h.b16 %v1788
      %v1854 = vunpack.c.l.b16 %v1789
      %v1855 = vunpack.c.h.b16 %v1789
      %v1856 = vunpack.c.l.b16 %v1790
      %v1857 = vunpack.c.h.b16 %v1790
      %v1858 = vunpack.c.l.b16 %v1791
      %v1859 = vunpack.c.h.b16 %v1791
      %v1860 = vunpack.c.l.b16 %v1792
      %v1861 = vunpack.c.h.b16 %v1792
      %v1862 = vunpack.c.l.b16 %v1793
      %v1863 = vunpack.c.h.b16 %v1793
      %v1864 = vunpack.c.l.b16 %v1794
      %v1865 = vunpack.c.h.b16 %v1794
      %v1866 = vunpack.c.l.b16 %v1795
      %v1867 = vunpack.c.h.b16 %v1795
      %v1868 = vunpack.c.l.b16 %v1796
      %v1869 = vunpack.c.h.b16 %v1796
      %v1870 = vunpack.c.l.b16 %v1797
      %v1871 = vunpack.c.h.b16 %v1797
      %v1872 = vunpack.c.l.b16 %v1798
      %v1873 = vunpack.c.h.b16 %v1798
      %v1874 = vunpack.c.l.b16 %v1799
      %v1875 = vunpack.c.h.b16 %v1799
      %v1876 = vunpack.c.l.b16 %v1800
      %v1877 = vunpack.c.h.b16 %v1800
      %v1878 = vunpack.c.l.b16 %v1801
      %v1879 = vunpack.c.h.b16 %v1801
      %v1880 = vunpack.c.l.b16 %v1802
      %v1881 = vunpack.c.h.b16 %v1802
      %v1882 = vunpack.c.l.b16 %v1803
      %v1883 = vunpack.c.h.b16 %v1803
      %v1884 = vunpack.c.l.b16 %v1804
      %v1885 = vunpack.c.h.b16 %v1804
      %v1886 = vunpack.c.l.b16 %v1805
      %v1887 = vunpack.c.h.b16 %v1805
      %v1888 = vunpack.c.l.b16 %v1806
      %v1889 = vunpack.c.h.b16 %v1806
      %v1890 = vunpack.c.l.b16 %v1807
      %v1891 = vunpack.c.h.b16 %v1807
      %v1892 = vunpack.c.l.b16 %v1808
      %v1893 = vunpack.c.h.b16 %v1808
      %v1894 = vunpack.c.l.b16 %v1809
      %v1895 = vunpack.c.h.b16 %v1809
      %v1896 = vunpack.c.l.b16 %v1810
      %v1897 = vunpack.c.h.b16 %v1810
      %v1898 = vunpack.c.l.b16 %v1811
      %v1899 = vunpack.c.h.b16 %v1811
      %v1900 = vunpack.c.l.b16 %v1812
      %v1901 = vunpack.c.h.b16 %v1812
      %v1902 = vunpack.c.l.b16 %v1813
      %v1903 = vunpack.c.h.b16 %v1813
      %v1904 = vunpack.c.l.b16 %v1814
      %v1905 = vunpack.c.h.b16 %v1814
      %v1906 = vunpack.c.l.b16 %v1815
      %v1907 = vunpack.c.h.b16 %v1815
      %v1908 = vunpack.c.l.b16 %v1816
      %v1909 = vunpack.c.h.b16 %v1816
      %v1910 = vunpack.c.l.b16 %v1817
      %v1911 = vunpack.c.h.b16 %v1817
      %v1912 = vunpack.c.l.b16 %v1818
      %v1913 = vunpack.c.h.b16 %v1818
      %v1914 = vunpack.c.l.b16 %v1819
      %v1915 = vunpack.c.h.b16 %v1819
      %v1916 = vpack.c.b16 %v1852, %v1852
      %v1917 = vpack.c.b16 %v1853, %v1853
      %v1918 = vpack.c.b16 %v1854, %v1854
      %v1919 = vpack.c.b16 %v1855, %v1855
      %v1920 = vpack.c.b16 %v1856, %v1856
      %v1921 = vpack.c.b16 %v1857, %v1857
      %v1922 = vpack.c.b16 %v1858, %v1858
      %v1923 = vpack.c.b16 %v1859, %v1859
      %v1924 = vpack.c.b16 %v1860, %v1860
      %v1925 = vpack.c.b16 %v1861, %v1861
      %v1926 = vpack.c.b16 %v1862, %v1862
      %v1927 = vpack.c.b16 %v1863, %v1863
      %v1928 = vpack.c.b16 %v1864, %v1864
      %v1929 = vpack.c.b16 %v1865, %v1865
      %v1930 = vpack.c.b16 %v1866, %v1866
      %v1931 = vpack.c.b16 %v1867, %v1867
      %v1932 = vpack.c.b16 %v1868, %v1868
      %v1933 = vpack.c.b16 %v1869, %v1869
      %v1934 = vpack.c.b16 %v1870, %v1870
      %v1935 = vpack.c.b16 %v1871, %v1871
      %v1936 = vpack.c.b16 %v1872, %v1872
      %v1937 = vpack.c.b16 %v1873, %v1873
      %v1938 = vpack.c.b16 %v1874, %v1874
      %v1939 = vpack.c.b16 %v1875, %v1875
      %v1940 = vpack.c.b16 %v1876, %v1876
      %v1941 = vpack.c.b16 %v1877, %v1877
      %v1942 = vpack.c.b16 %v1878, %v1878
      %v1943 = vpack.c.b16 %v1879, %v1879
      %v1944 = vpack.c.b16 %v1880, %v1880
      %v1945 = vpack.c.b16 %v1881, %v1881
      %v1946 = vpack.c.b16 %v1882, %v1882
      %v1947 = vpack.c.b16 %v1883, %v1883
      %v1948 = vpack.c.b16 %v1884, %v1884
      %v1949 = vpack.c.b16 %v1885, %v1885
      %v1950 = vpack.c.b16 %v1886, %v1886
      %v1951 = vpack.c.b16 %v1887, %v1887
      %v1952 = vpack.c.b16 %v1888, %v1888
      %v1953 = vpack.c.b16 %v1889, %v1889
      %v1954 = vpack.c.b16 %v1890, %v1890
      %v1955 = vpack.c.b16 %v1891, %v1891
      %v1956 = vpack.c.b16 %v1892, %v1892
      %v1957 = vpack.c.b16 %v1893, %v1893
      %v1958 = vpack.c.b16 %v1894, %v1894
      %v1959 = vpack.c.b16 %v1895, %v1895
      %v1960 = vpack.c.b16 %v1896, %v1896
      %v1961 = vpack.c.b16 %v1897, %v1897
      %v1962 = vpack.c.b16 %v1898, %v1898
      %v1963 = vpack.c.b16 %v1899, %v1899
      %v1964 = vpack.c.b16 %v1900, %v1900
      %v1965 = vpack.c.b16 %v1901, %v1901
      %v1966 = vpack.c.b16 %v1902, %v1902
      %v1967 = vpack.c.b16 %v1903, %v1903
      %v1968 = vpack.c.b16 %v1904, %v1904
      %v1969 = vpack.c.b16 %v1905, %v1905
      %v1970 = vpack.c.b16 %v1906, %v1906
      %v1971 = vpack.c.b16 %v1907, %v1907
      %v1972 = vpack.c.b16 %v1908, %v1908
      %v1973 = vpack.c.b16 %v1909, %v1909
      %v1974 = vpack.c.b16 %v1910, %v1910
      %v1975 = vpack.c.b16 %v1911, %v1911
      %v1976 = vpack.c.b16 %v1912, %v1912
      %v1977 = vpack.c.b16 %v1913, %v1913
      %v1978 = vpack.c.b16 %v1914, %v1914
      %v1979 = vpack.c.b16 %v1915, %v1915
      %2044 = vst [vmem:[%s329] sm:$0xf] %v1916
      %2045 = vst [vmem:[%s329 + $0x4] sm:$0xf] %v1917
      %2046 = vst [vmem:[%s329 + $0x8] sm:$0xf] %v1918
      %2047 = vst [vmem:[%s329 + $0xc] sm:$0xf] %v1919
      %2048 = vst [vmem:[%s329 + $0x10] sm:$0xf] %v1920
      %2049 = vst [vmem:[%s329 + $0x14] sm:$0xf] %v1921
      %2050 = vst [vmem:[%s329 + $0x18] sm:$0xf] %v1922
      %2051 = vst [vmem:[%s329 + $0x1c] sm:$0xf] %v1923
      %2052 = vst [vmem:[%s329 + $0x20] sm:$0xf] %v1924
      %2053 = vst [vmem:[%s329 + $0x24] sm:$0xf] %v1925
      %2054 = vst [vmem:[%s329 + $0x28] sm:$0xf] %v1926
      %2055 = vst [vmem:[%s329 + $0x2c] sm:$0xf] %v1927
      %2056 = vst [vmem:[%s329 + $0x30] sm:$0xf] %v1928
      %2057 = vst [vmem:[%s329 + $0x34] sm:$0xf] %v1929
      %2058 = vst [vmem:[%s329 + $0x38] sm:$0xf] %v1930
      %2059 = vst [vmem:[%s329 + $0x3c] sm:$0xf] %v1931
      %2060 = vst [vmem:[%s329 + $0x40] sm:$0xf] %v1932
      %2061 = vst [vmem:[%s329 + $0x44] sm:$0xf] %v1933
      %2062 = vst [vmem:[%s329 + $0x48] sm:$0xf] %v1934
      %2063 = vst [vmem:[%s329 + $0x4c] sm:$0xf] %v1935
      %2064 = vst [vmem:[%s329 + $0x50] sm:$0xf] %v1936
      %2065 = vst [vmem:[%s329 + $0x54] sm:$0xf] %v1937
      %2066 = vst [vmem:[%s329 + $0x58] sm:$0xf] %v1938
      %2067 = vst [vmem:[%s329 + $0x5c] sm:$0xf] %v1939
      %2068 = vst [vmem:[%s329 + $0x60] sm:$0xf] %v1940
      %2069 = vst [vmem:[%s329 + $0x64] sm:$0xf] %v1941
      %2070 = vst [vmem:[%s329 + $0x68] sm:$0xf] %v1942
      %2071 = vst [vmem:[%s329 + $0x6c] sm:$0xf] %v1943
      %2072 = vst [vmem:[%s329 + $0x70] sm:$0xf] %v1944
      %2073 = vst [vmem:[%s329 + $0x74] sm:$0xf] %v1945
      %2074 = vst [vmem:[%s329 + $0x78] sm:$0xf] %v1946
      %2075 = vst [vmem:[%s329 + $0x7c] sm:$0xf] %v1947
      %2076 = vst [vmem:[%s329 + $0x80] sm:$0xf] %v1948
      %2077 = vst [vmem:[%s329 + $0x84] sm:$0xf] %v1949
      %2078 = vst [vmem:[%s329 + $0x88] sm:$0xf] %v1950
      %2079 = vst [vmem:[%s329 + $0x8c] sm:$0xf] %v1951
      %2080 = vst [vmem:[%s329 + $0x90] sm:$0xf] %v1952
      %2081 = vst [vmem:[%s329 + $0x94] sm:$0xf] %v1953
      %2082 = vst [vmem:[%s329 + $0x98] sm:$0xf] %v1954
      %2083 = vst [vmem:[%s329 + $0x9c] sm:$0xf] %v1955
      %2084 = vst [vmem:[%s329 + $0xa0] sm:$0xf] %v1956
      %2085 = vst [vmem:[%s329 + $0xa4] sm:$0xf] %v1957
      %2086 = vst [vmem:[%s329 + $0xa8] sm:$0xf] %v1958
      %2087 = vst [vmem:[%s329 + $0xac] sm:$0xf] %v1959
      %2088 = vst [vmem:[%s329 + $0xb0] sm:$0xf] %v1960
      %2089 = vst [vmem:[%s329 + $0xb4] sm:$0xf] %v1961
      %2090 = vst [vmem:[%s329 + $0xb8] sm:$0xf] %v1962
      %2091 = vst [vmem:[%s329 + $0xbc] sm:$0xf] %v1963
      %2092 = vst [vmem:[%s329 + $0xc0] sm:$0xf] %v1964
      %2093 = vst [vmem:[%s329 + $0xc4] sm:$0xf] %v1965
      %2094 = vst [vmem:[%s329 + $0xc8] sm:$0xf] %v1966
      %2095 = vst [vmem:[%s329 + $0xcc] sm:$0xf] %v1967
      %2096 = vst [vmem:[%s329 + $0xd0] sm:$0xf] %v1968
      %2097 = vst [vmem:[%s329 + $0xd4] sm:$0xf] %v1969
      %2098 = vst [vmem:[%s329 + $0xd8] sm:$0xf] %v1970
      %2099 = vst [vmem:[%s329 + $0xdc] sm:$0xf] %v1971
      %2100 = vst [vmem:[%s329 + $0xe0] sm:$0xf] %v1972
      %2101 = vst [vmem:[%s329 + $0xe4] sm:$0xf] %v1973
      %2102 = vst [vmem:[%s329 + $0xe8] sm:$0xf] %v1974
      %2103 = vst [vmem:[%s329 + $0xec] sm:$0xf] %v1975
      %2104 = vst [vmem:[%s329 + $0xf0] sm:$0xf] %v1976
      %2105 = vst [vmem:[%s329 + $0xf4] sm:$0xf] %v1977
      %2106 = vst [vmem:[%s329 + $0xf8] sm:$0xf] %v1978
      %2107 = vst [vmem:[%s329 + $0xfc] sm:$0xf] %v1979
      %s2108 = smul.u32 64, %s23
      %p2109 = scmp.lt.s32.totalorder %s2108, 127
      %s2110 = scalar_select %p2109, %s2108, 127
      %s2111 = smul.addr %s2110, 4
      %s2112 = scalar_lea.vmem %s6, %s2111
      // Predicated region
      $region41: #{patch_mlp_grouped.1} parent=39 // pred_check
        %p2113 = pneg %p179
      $region42: #{patch_mlp_grouped.1} parent=39 // pred_check_branch
        %2115 = sbr.rel (%p2113) target = $region44
      $region43: #{patch_mlp_grouped.1} parent=39 // pred_region
        %s2116 = smul.u32 64, %s23
      $region44: #{patch_mlp_grouped.1} parent=39 // pred_fallthru
        _
    $region40: #{patch_mlp_grouped.1} parent=5 // pred_fallthru
      _
    %p2117 = scmp.le.s32.totalorder 2, %s18
    // Predicated region
    $region45: #{patch_mlp_grouped.1} parent=5 // pred_check
      %p2118 = pneg %p2117
    $region46: #{patch_mlp_grouped.1} parent=5 // pred_check_branch
      %2120 = sbr.rel (%p2118) target = $region48
    $region47: #{patch_mlp_grouped.1} parent=5 // pred_region
      %s2121 = ssub.s32 %s18, 2
      // Predicated region
      $region49: #{patch_mlp_grouped.1} parent=47 // pred_check
        %p2122 = pneg %p185
      $region50: #{patch_mlp_grouped.1} parent=47 // pred_check_branch
        %2124 = sbr.rel (%p2122) target = $region52
      $region51: #{patch_mlp_grouped.1} parent=47 // pred_region
        %s2125 = smul.u32 64, %s24
        %p2126 = scmp.lt.s32.totalorder %s2125, 127
        %s2127 = scalar_select %p2126, %s2125, 127
        %s2128 = smul.addr %s2127, 4
        %s2129 = scalar_lea.vmem %s6, %s2128
      $region52: #{patch_mlp_grouped.1} parent=47 // pred_fallthru
        _
    $region48: #{patch_mlp_grouped.1} parent=5 // pred_fallthru
      _
  $region6: #{patch_mlp_grouped.1} parent=0 // loop_footer
    %s22 = sadd.s32 1, %s18
  $region7: #{patch_mlp_grouped.1} parent=0 // loop_footer_branch
    %17 = sbr.rel target = $region3
  $region8: #{patch_mlp_grouped.1} parent=0 // loop_exit
    _

</llo_original>
